<compile_context>
chip_gen: v5e
topology: v5e:2x2
jax: 0.10.0
libtpu: 0.0.40
codegen_flags: <defaults>
</compile_context>

<pallas_src>
import functools

import jax
import jax.numpy as jnp
from jax import lax
from jax.experimental import pallas as pl
from jax.experimental.pallas import tpu as pltpu

_MIB = 1 << 20


def _vmem_capacity_bytes():
    try:
        info = pltpu.get_tpu_info()
        cap = int(getattr(info, "vmem_capacity_bytes", 0))
        if cap > 0:
            return cap
    except Exception:
        pass
    return 64 * _MIB  # conservative default: v7x per-TensorCore VMEM


def _supcon2_kernel(labels2_ref, f2n_ref, f1_ref, f2t_ref, labels1_ref,
                    numsel_ref, tot_ref, cnt_ref, *, inv_t, tm, n, fuse_dots):
    op_dtype = f2n_ref.dtype

    # --- normalize this row tile of features1 (f32 math, rsqrt on the EUP) --
    f1 = f1_ref[...].astype(jnp.float32)                           # (TM, D)
    ssq1 = jnp.sum(f1 * f1, axis=1, keepdims=True)
    f1n = f1 * lax.rsqrt(jnp.maximum(ssq1, 1e-24))                 # == f1 / max(||f1||, 1e-12)

    # Fold 1/T into the small (TM, D) LHS operands, not the (TM, N) products.
    lhs1 = (f1n * inv_t).astype(op_dtype)
    lhs2 = (f2t_ref[...].astype(jnp.float32) * inv_t).astype(op_dtype)
    rhs = f2n_ref[...]                                             # (N, D), resident, shared

    dnums = (((1,), (1,)), ((), ()))                               # contract on D: A @ B.T

    # --- denominator path first: adc2 + its reductions are dead before the
    #     adc1 / positives temporaries materialize (lower peak VMEM). --------
    if fuse_dots:
        # v5e/v6e: one MXU pass over the shared RHS for both products.
        adc = lax.dot_general(jnp.concatenate([lhs2, lhs1], axis=0), rhs, dnums,
                              preferred_element_type=jnp.float32)  # (2*TM, N)
        adc2, adc1 = adc[:tm], adc[tm:]
    else:
        adc2 = lax.dot_general(lhs2, rhs, dnums,
                               preferred_element_type=jnp.float32)  # (TM, N)

    row0 = pl.multiple_of(pl.program_id(0) * tm, tm)
    rows = lax.broadcasted_iota(jnp.int32, (tm, n), 0) + row0      # global anchor row id
    cols = lax.broadcasted_iota(jnp.int32, (tm, n), 1)
    diag = rows == cols
    rowmax2 = jnp.max(adc2, axis=1, keepdims=True)                 # includes diag (as in torch)
    exp2 = jnp.where(diag, 0.0, jnp.exp(adc2 - rowmax2))           # exact diagonal removal
    log_denom = jnp.log(jnp.sum(exp2, axis=1, keepdims=True))      # (TM, 1)
    # TODO(synk): torch raises on NaN in log_probs and prints positive-row
    # counts; data-dependent host control flow / printing is skipped here.

    # --- positives / numerator path -----------------------------------------
    if not fuse_dots:
        adc1 = lax.dot_general(lhs1, rhs, dnums,
                               preferred_element_type=jnp.float32)  # (TM, N)
    logits1 = adc1 - jnp.max(adc1, axis=1, keepdims=True)
    eq = labels1_ref[...] == labels2_ref[...]                      # (TM,1)==(1,N) -> (TM,N)
    pos_sum = jnp.sum(jnp.where(eq, logits1, 0.0), axis=1, keepdims=True)   # (TM, 1)

    # Selected rows have num_sel == num_positives, so
    #   row_value = pos_sum / num_sel - log_denom    (num_pos never needed).
    num_sel = numsel_ref[...]                                      # (TM, 1)
    sel = num_sel > 0.0
    per_row = jnp.where(sel, pos_sum / jnp.where(sel, num_sel, 1.0) - log_denom, 0.0)

    tot_ref[...] = jnp.sum(per_row, axis=0, keepdims=True).reshape(1, 1, 1)
    cnt_ref[...] = jnp.sum(sel.astype(jnp.float32), axis=0,
                           keepdims=True).reshape(1, 1, 1)


def _pick_row_tile(n, d, in_itemsize, op_itemsize, temp_budget, fuse_dots):
    """Largest sublane-aligned row tile dividing N whose per-step working set
    (live (TM,N) f32 temporaries + double-buffered row-tile inputs) fits the
    generation-aware budget."""
    temp_rows = (8 if fuse_dots else 6) * n * 4        # live f32 bytes per anchor row
    for tm in (512, 256, 128, 64, 32, 16, 8):
        if tm > n or n % tm:
            continue
        tile_io = 2 * (tm * d * (in_itemsize + op_itemsize) + 8 * tm)
        if tm * temp_rows + tile_io <= temp_budget:
            return tm
    return 8 if (n >= 8 and n % 8 == 0) else n


def supcon_loss2(worstk, features1, features2, labels1, labels2,
                 temperature=0.5, scale_by_temperature=True, row_tile=None,
                 fuse_dots=None, mxu_dtype=None):
    """JAX/Pallas equivalent of SupConLoss2.forward (tmask / mask args unused)."""
    del scale_by_temperature  # unused in the reference forward as well
    n, d = features1.shape
    if features2.shape != (n, d):
        raise ValueError("features1 and features2 must have the same shape")
    if labels1.shape[0] != n:
        raise ValueError("Num of labels does not match num of features")
    inv_t = 1.0 / float(temperature)

    op_dtype = jnp.dtype(features1.dtype) if mxu_dtype is None else jnp.dtype(mxu_dtype)
    in_itemsize = jnp.dtype(features1.dtype).itemsize
    op_itemsize = op_dtype.itemsize

    # ---- generation-aware VMEM budgeting ------------------------------------
    vmem_cap = _vmem_capacity_bytes()
    resident_bytes = n * d * op_itemsize + n * 4        # single-buffered f2n + labels2 row
    if resident_bytes + 4 * _MIB > int(0.9 * vmem_cap):
        # TODO(synk): add a D-chunked path (trailing "arbitrary" K grid axis with
        # an f32 VMEM accumulator) for configs whose normalized features2 does
        # not fit in per-core VMEM (the ceiling is 2x lower on v7x).
        raise ValueError(
            f"features2 ({n}x{d}, {op_itemsize}B) does not fit the resident-RHS "
            f"design on this TPU ({vmem_cap // _MIB} MiB VMEM)")
    if fuse_dots is None:
        fuse_dots = vmem_cap >= 100 * _MIB              # v5e/v6e (128 MiB) yes, v7x (64 MiB) no

    temp_budget = int(0.92 * vmem_cap) - resident_bytes - 2 * _MIB
    tm = (_pick_row_tile(n, d, in_itemsize, op_itemsize, temp_budget, fuse_dots)
          if row_tile is None else int(row_tile))
    if n % tm != 0:
        raise ValueError(f"row_tile {tm} must divide batch size {n}")
    if tm % 8 != 0:
        fuse_dots = False                               # keep sublane concat aligned
    num_tiles = n // tm

    temp_rows = (8 if fuse_dots else 6) * n * 4
    vmem_estimate = (2 * resident_bytes                               # residents (fallback may dbl-buffer)
                     + 2 * (tm * d * (in_itemsize + op_itemsize) + 8 * tm)  # row-tile inputs
                     + tm * temp_rows                                 # (TM, N) temporaries
                     + 2 * _MIB)
    vmem_limit = int(min(max(vmem_estimate, 32 * _MIB), vmem_cap))    # clamp to physical VMEM

    # ---- cheap label glue: ints / [N,1] columns only, no dense [N,N] masks --
    labels1_idx = jnp.argmax(labels1, axis=1).astype(jnp.int32).reshape(n, 1)
    labels2_col = labels2.astype(jnp.int32).reshape(n, 1)
    labels2_row = labels2_col.reshape(1, n)
    mask3 = jnp.any(labels2_col == worstk.astype(jnp.int32).reshape(1, -1),
                    axis=1, keepdims=True)                            # [N,1] bool
    num_pos = jnp.sum((labels1_idx == labels2_row).astype(jnp.float32),
                      axis=1, keepdims=True)                          # [N,1]
    num_sel = jnp.where(mask3, num_pos, 0.0)                          # [N,1] f32

    # ---- normalize features2 once (resident RHS shared by all row tiles) ----
    f2_f32 = features2.astype(jnp.float32)
    ssq2 = jnp.sum(f2_f32 * f2_f32, axis=1, keepdims=True)
    f2n = (f2_f32 * lax.rsqrt(jnp.maximum(ssq2, 1e-24))).astype(op_dtype)

    kernel = functools.partial(_supcon2_kernel, inv_t=inv_t, tm=tm, n=n,
                               fuse_dots=fuse_dots)

    def _make_call(single_buffer_resident):
        resident_kwargs = ({"pipeline_mode": pl.Buffered(1)}
                           if single_buffer_resident else {})
        grid_spec = pltpu.PrefetchScalarGridSpec(
            num_scalar_prefetch=0,
            grid=(num_tiles,),
            in_specs=[
                pl.BlockSpec((1, n), lambda i: (0, 0), **resident_kwargs),  # labels2 row (resident)
                pl.BlockSpec((n, d), lambda i: (0, 0), **resident_kwargs),  # normalized f2 (resident)
                pl.BlockSpec((tm, d), lambda i: (i, 0)),                    # features1 row tile
                pl.BlockSpec((tm, d), lambda i: (i, 0)),                    # normalized f2 row tile
                pl.BlockSpec((tm, 1), lambda i: (i, 0)),                    # labels1 idx tile
                pl.BlockSpec((tm, 1), lambda i: (i, 0)),                    # num_sel tile
            ],
            out_specs=(
                pl.BlockSpec((1, 1, 1), lambda i: (i, 0, 0)),  # per-tile sum
                pl.BlockSpec((1, 1, 1), lambda i: (i, 0, 0)),  # per-tile count
            ),
        )
        return pl.pallas_call(
            kernel,
            out_shape=(jax.ShapeDtypeStruct((num_tiles, 1, 1), jnp.float32),
                       jax.ShapeDtypeStruct((num_tiles, 1, 1), jnp.float32)),
            grid_spec=grid_spec,
            compiler_params=pltpu.CompilerParams(
                # TODO(synk): if an xprof profile shows one idle TensorCore on
                # v7x, switch this axis to pltpu.CORE_PARALLEL / pl.core_map.
                dimension_semantics=("parallel",),
                vmem_limit_bytes=vmem_limit),
        )

    args = (labels2_row, f2n, features1, f2n, labels1_idx, num_sel)
    try:
        totals, counts = _make_call(single_buffer_resident=True)(*args)
    except Exception:
        # pl.Buffered(1) / pipeline_mode unsupported on this JAX build: fall
        # back to default double-buffered residents (perf-only difference).
        totals, counts = _make_call(single_buffer_resident=False)(*args)

    # TODO(synk): if no row is selected this is 0/0 -> NaN, matching torch's
    # mean-of-empty behaviour.
    return -jnp.sum(totals) / jnp.sum(counts)


def _reference(worstk, features1, features2, labels1, labels2, temperature=0.5):
    """Pure-JAX reference mirroring the torch code (full masked formulation)."""
    f1 = features1 / jnp.maximum(
        jnp.linalg.norm(features1, axis=1, keepdims=True), 1e-12)
    f2 = features2 / jnp.maximum(
        jnp.linalg.norm(features2, axis=1, keepdims=True), 1e-12)
    l1 = jnp.argmax(labels1, axis=1).reshape(-1, 1)
    l2 = labels2.reshape(-1, 1)
    mask = (l1 == l2.T).astype(jnp.float32)
    mask2 = (l2 == l2.T).astype(jnp.float32)
    mask3 = jnp.any(l2 == worstk.reshape(1, -1), axis=1).astype(jnp.float32)
    n = f2.shape[0]
    adc1 = (f1 @ f2.T) / temperature
    adc2 = (f2 @ f2.T) / temperature
    logits1 = adc1 - jnp.max(adc1, axis=1, keepdims=True)
    logits2 = adc2 - jnp.max(adc2, axis=1, keepdims=True)
    exp2 = jnp.exp(logits2)
    eye = jnp.eye(n, dtype=jnp.float32)
    pos2 = mask2 * (1.0 - eye)
    neg2 = 1.0 - mask2
    denom = (jnp.sum(exp2 * neg2, axis=1, keepdims=True)
             + jnp.sum(exp2 * pos2, axis=1, keepdims=True))
    log_probs = logits1 - jnp.log(denom)
    num_pos = jnp.sum(mask, axis=1)
    num_pos_sel = mask3 * num_pos
    row_sum = jnp.sum(log_probs * mask, axis=1)
    sel = num_pos_sel > 0
    vals = row_sum[sel] / num_pos_sel[sel]
    return -jnp.mean(vals)


if __name__ == "__main__":
    key = jax.random.PRNGKey(0)
    N, D, C = 16, 32, 4
    k1, k2 = jax.random.split(key)
    features1 = jax.random.normal(k1, (N, D), dtype=jnp.float32)
    features2 = jax.random.normal(k2, (N, D), dtype=jnp.float32)

    labels1_idx = jnp.array([0, 1, 2, 3, 1, 2, 3, 0, 2, 0, 1, 3, 3, 2, 0, 1],
                            dtype=jnp.int32)
    labels1 = jax.nn.one_hot(labels1_idx, C, dtype=jnp.float32)   # one-hot labels
    labels2 = jnp.array([0, 1, 2, 3, 0, 1, 2, 3, 1, 2, 3, 0, 2, 3, 0, 1],
                        dtype=jnp.int32)                          # class indices
    worstk = jnp.array([0, 2], dtype=jnp.int32)

    ref = _reference(worstk, features1, features2, labels1, labels2,
                     temperature=0.5)

    # Exercise both MXU paths (split / fused) with a 2-tile grid, plus the
    # generation-aware auto tile picker (single full tile at this size).
    loss_split = supcon_loss2(worstk, features1, features2, labels1, labels2,
                              temperature=0.5, row_tile=8, fuse_dots=False)
    loss_fused = supcon_loss2(worstk, features1, features2, labels1, labels2,
                              temperature=0.5, row_tile=8, fuse_dots=True)
    loss_auto = supcon_loss2(worstk, features1, features2, labels1, labels2,
                             temperature=0.5)
    jax.block_until_ready((loss_split, loss_fused, loss_auto))
    assert jnp.allclose(loss_split, ref, rtol=1e-4, atol=1e-4), (loss_split, ref)
    assert jnp.allclose(loss_fused, ref, rtol=1e-4, atol=1e-4), (loss_fused, ref)
    assert jnp.allclose(loss_auto, ref, rtol=1e-4, atol=1e-4), (loss_auto, ref)

    # bf16 MXU operands (the v5e recommendation for f32 inputs): looser check.
    loss_bf16 = supcon_loss2(worstk, features1, features2, labels1, labels2,
                             temperature=0.5, row_tile=8,
                             mxu_dtype=jnp.bfloat16)
    jax.block_until_ready(loss_bf16)
    assert jnp.allclose(loss_bf16, ref, rtol=1e-1, atol=1e-1), (loss_bf16, ref)

    print("KERNEL_OK")
</pallas_src>

<mosaic_0001>
module attributes {stable_mosaic.version = 11 : i64} {
  func.func @_supcon2_kernel(%arg0: i32, %arg1: memref<1x16xi32, #tpu.memory_space<vmem>>, %arg2: memref<16x32xf32, #tpu.memory_space<vmem>>, %arg3: memref<8x32xf32, #tpu.memory_space<vmem>>, %arg4: memref<8x32xf32, #tpu.memory_space<vmem>>, %arg5: memref<8x1xi32, #tpu.memory_space<vmem>>, %arg6: memref<8x1xf32, #tpu.memory_space<vmem>>, %arg7: memref<1x1x1xf32, #tpu.memory_space<vmem>>, %arg8: memref<1x1x1xf32, #tpu.memory_space<vmem>>) attributes {dimension_semantics = [#tpu.dimension_semantics<parallel>], iteration_bounds = array<i64: 2>, scalar_prefetch = 0 : i64, scratch_operands = 0 : i64, tpu.core_type = #tpu.core_type<tc>, window_params = [{pipeline_mode = #tpu.pipeline_mode<synchronous>, transform_indices = @transform_0, window_bounds = array<i64: 1, 16>}, {pipeline_mode = #tpu.pipeline_mode<synchronous>, transform_indices = @transform_1, window_bounds = array<i64: 16, 32>}, {transform_indices = @transform_2, window_bounds = array<i64: 8, 32>}, {transform_indices = @transform_3, window_bounds = array<i64: 8, 32>}, {transform_indices = @transform_4, window_bounds = array<i64: 8, 1>}, {transform_indices = @transform_5, window_bounds = array<i64: 8, 1>}, {transform_indices = @transform_6, window_bounds = array<i64: 1, 1, 1>}, {transform_indices = @transform_7, window_bounds = array<i64: 1, 1, 1>}]} {
    %c0 = arith.constant 0 : index
    %c0_0 = arith.constant 0 : index
    %0 = vector.load %arg3[%c0, %c0_0] : memref<8x32xf32, #tpu.memory_space<vmem>>, vector<8x32xf32>
    %1 = arith.mulf %0, %0 : vector<8x32xf32>
    %cst = arith.constant dense<0.000000e+00> : vector<8xf32>
    %2 = vector.multi_reduction <add>, %1, %cst [1] : vector<8x32xf32> to vector<8xf32>
    %3 = vector.shape_cast %2 : vector<8xf32> to vector<8x1xf32>
    %cst_1 = arith.constant 1.000000e-24 : f32
    %4 = vector.broadcast %cst_1 : f32 to vector<8x1xf32>
    %5 = arith.maximumf %3, %4 : vector<8x1xf32>
    %6 = math.rsqrt %5 : vector<8x1xf32>
    %7 = vector.broadcast %6 : vector<8x1xf32> to vector<8x32xf32>
    %8 = arith.mulf %0, %7 : vector<8x32xf32>
    %cst_2 = arith.constant 2.000000e+00 : f32
    %9 = vector.broadcast %cst_2 : f32 to vector<8x32xf32>
    %10 = arith.mulf %8, %9 : vector<8x32xf32>
    %c0_3 = arith.constant 0 : index
    %c0_4 = arith.constant 0 : index
    %11 = vector.load %arg4[%c0_3, %c0_4] : memref<8x32xf32, #tpu.memory_space<vmem>>, vector<8x32xf32>
    %cst_5 = arith.constant 2.000000e+00 : f32
    %12 = vector.broadcast %cst_5 : f32 to vector<8x32xf32>
    %13 = arith.mulf %11, %12 : vector<8x32xf32>
    %c0_6 = arith.constant 0 : index
    %c0_7 = arith.constant 0 : index
    %14 = vector.load %arg2[%c0_6, %c0_7] : memref<16x32xf32, #tpu.memory_space<vmem>>, vector<16x32xf32>
    %cst_8 = arith.constant dense<0.000000e+00> : vector<8x16xf32>
    %15 = tpu.matmul %13, %14, %cst_8 {dimension_numbers = #tpu.dot_dimension_numbers<[1], [1], [0], [0], [0, 0, 1, 0], [], []>} : vector<8x32xf32>, vector<16x32xf32>, vector<8x16xf32> -> vector<8x16xf32>
    %c8_i32 = arith.constant 8 : i32
    %16 = arith.muli %arg0, %c8_i32 : i32
    %17 = tpu.assume_multiple %16, 8 : i32
    %18 = tpu.iota {dimensions = array<i32: 0>} : vector<8x16xi32>
    %19 = vector.broadcast %17 : i32 to vector<8x16xi32>
    %20 = arith.addi %18, %19 : vector<8x16xi32>
    %21 = tpu.iota {dimensions = array<i32: 1>} : vector<8x16xi32>
    %22 = arith.cmpi eq, %20, %21 : vector<8x16xi32>
    %cst_9 = arith.constant dense<0xFF800000> : vector<8xf32>
    %23 = vector.multi_reduction <maximumf>, %15, %cst_9 [1] : vector<8x16xf32> to vector<8xf32>
    %24 = vector.shape_cast %23 : vector<8xf32> to vector<8x1xf32>
    %25 = vector.broadcast %24 : vector<8x1xf32> to vector<8x16xf32>
    %26 = arith.subf %15, %25 : vector<8x16xf32>
    %27 = math.exp %26 : vector<8x16xf32>
    %cst_10 = arith.constant 0.000000e+00 : f32
    %28 = vector.broadcast %cst_10 : f32 to vector<8x16xf32>
    %29 = arith.select %22, %28, %27 : vector<8x16xi1>, vector<8x16xf32>
    %cst_11 = arith.constant dense<0.000000e+00> : vector<8xf32>
    %30 = vector.multi_reduction <add>, %29, %cst_11 [1] : vector<8x16xf32> to vector<8xf32>
    %31 = vector.shape_cast %30 : vector<8xf32> to vector<8x1xf32>
    %32 = math.log %31 : vector<8x1xf32>
    %cst_12 = arith.constant dense<0.000000e+00> : vector<8x16xf32>
    %33 = tpu.matmul %10, %14, %cst_12 {dimension_numbers = #tpu.dot_dimension_numbers<[1], [1], [0], [0], [0, 0, 1, 0], [], []>} : vector<8x32xf32>, vector<16x32xf32>, vector<8x16xf32> -> vector<8x16xf32>
    %cst_13 = arith.constant dense<0xFF800000> : vector<8xf32>
    %34 = vector.multi_reduction <maximumf>, %33, %cst_13 [1] : vector<8x16xf32> to vector<8xf32>
    %35 = vector.shape_cast %34 : vector<8xf32> to vector<8x1xf32>
    %36 = vector.broadcast %35 : vector<8x1xf32> to vector<8x16xf32>
    %37 = arith.subf %33, %36 : vector<8x16xf32>
    %c0_14 = arith.constant 0 : index
    %c0_15 = arith.constant 0 : index
    %38 = vector.load %arg5[%c0_14, %c0_15] : memref<8x1xi32, #tpu.memory_space<vmem>>, vector<8x1xi32>
    %c0_16 = arith.constant 0 : index
    %c0_17 = arith.constant 0 : index
    %39 = vector.load %arg1[%c0_16, %c0_17] : memref<1x16xi32, #tpu.memory_space<vmem>>, vector<1x16xi32>
    %40 = vector.broadcast %38 : vector<8x1xi32> to vector<8x16xi32>
    %41 = vector.broadcast %39 : vector<1x16xi32> to vector<8x16xi32>
    %42 = arith.cmpi eq, %40, %41 : vector<8x16xi32>
    %cst_18 = arith.constant 0.000000e+00 : f32
    %43 = vector.broadcast %cst_18 : f32 to vector<8x16xf32>
    %44 = arith.select %42, %37, %43 : vector<8x16xi1>, vector<8x16xf32>
    %cst_19 = arith.constant dense<0.000000e+00> : vector<8xf32>
    %45 = vector.multi_reduction <add>, %44, %cst_19 [1] : vector<8x16xf32> to vector<8xf32>
    %46 = vector.shape_cast %45 : vector<8xf32> to vector<8x1xf32>
    %c0_20 = arith.constant 0 : index
    %c0_21 = arith.constant 0 : index
    %47 = vector.load %arg6[%c0_20, %c0_21] : memref<8x1xf32, #tpu.memory_space<vmem>>, vector<8x1xf32>
    %cst_22 = arith.constant 0.000000e+00 : f32
    %48 = vector.broadcast %cst_22 : f32 to vector<8x1xf32>
    %49 = arith.cmpf ogt, %47, %48 : vector<8x1xf32>
    %cst_23 = arith.constant 1.000000e+00 : f32
    %50 = vector.broadcast %cst_23 : f32 to vector<8x1xf32>
    %51 = arith.select %49, %47, %50 : vector<8x1xi1>, vector<8x1xf32>
    %52 = arith.divf %46, %51 : vector<8x1xf32>
    %53 = arith.subf %52, %32 : vector<8x1xf32>
    %cst_24 = arith.constant 0.000000e+00 : f32
    %54 = vector.broadcast %cst_24 : f32 to vector<8x1xf32>
    %55 = arith.select %49, %53, %54 : vector<8x1xi1>, vector<8x1xf32>
    %cst_25 = arith.constant dense<0.000000e+00> : vector<1xf32>
    %56 = vector.multi_reduction <add>, %55, %cst_25 [0] : vector<8x1xf32> to vector<1xf32>
    %57 = vector.shape_cast %56 : vector<1xf32> to vector<1x1xf32>
    %58 = vector.shape_cast %57 : vector<1x1xf32> to vector<1x1x1xf32>
    %c0_26 = arith.constant 0 : index
    %c0_27 = arith.constant 0 : index
    %c0_28 = arith.constant 0 : index
    %59 = vector.load %arg7[%c0_26, %c0_27, %c0_28] : memref<1x1x1xf32, #tpu.memory_space<vmem>>, vector<1x1x1xf32>
    tpu.vector_store %arg7[%c0_26, %c0_27, %c0_28], %58 {strides = array<i32>} : memref<1x1x1xf32, #tpu.memory_space<vmem>>, vector<1x1x1xf32>,
    %60 = arith.extui %49 : vector<8x1xi1> to vector<8x1xi32>
    %61 = arith.sitofp %60 : vector<8x1xi32> to vector<8x1xf32>
    %cst_29 = arith.constant dense<0.000000e+00> : vector<1xf32>
    %62 = vector.multi_reduction <add>, %61, %cst_29 [0] : vector<8x1xf32> to vector<1xf32>
    %63 = vector.shape_cast %62 : vector<1xf32> to vector<1x1xf32>
    %64 = vector.shape_cast %63 : vector<1x1xf32> to vector<1x1x1xf32>
    %c0_30 = arith.constant 0 : index
    %c0_31 = arith.constant 0 : index
    %c0_32 = arith.constant 0 : index
    %65 = vector.load %arg8[%c0_30, %c0_31, %c0_32] : memref<1x1x1xf32, #tpu.memory_space<vmem>>, vector<1x1x1xf32>
    tpu.vector_store %arg8[%c0_30, %c0_31, %c0_32], %64 {strides = array<i32>} : memref<1x1x1xf32, #tpu.memory_space<vmem>>, vector<1x1x1xf32>,
    return
  }
  func.func @transform_0(%arg0: i32) -> (i32, i32) {
    %c0_i32 = arith.constant 0 : i32
    %c0_i32_0 = arith.constant 0 : i32
    %c0_i32_1 = arith.constant 0 : i32
    return %c0_i32, %c0_i32_0 : i32, i32
  }
  func.func @transform_1(%arg0: i32) -> (i32, i32) {
    %c0_i32 = arith.constant 0 : i32
    %c0_i32_0 = arith.constant 0 : i32
    %c0_i32_1 = arith.constant 0 : i32
    return %c0_i32, %c0_i32_0 : i32, i32
  }
  func.func @transform_2(%arg0: i32) -> (i32, i32) {
    %c0_i32 = arith.constant 0 : i32
    %c0_i32_0 = arith.constant 0 : i32
    return %arg0, %c0_i32 : i32, i32
  }
  func.func @transform_3(%arg0: i32) -> (i32, i32) {
    %c0_i32 = arith.constant 0 : i32
    %c0_i32_0 = arith.constant 0 : i32
    return %arg0, %c0_i32 : i32, i32
  }
  func.func @transform_4(%arg0: i32) -> (i32, i32) {
    %c0_i32 = arith.constant 0 : i32
    %c0_i32_0 = arith.constant 0 : i32
    return %arg0, %c0_i32 : i32, i32
  }
  func.func @transform_5(%arg0: i32) -> (i32, i32) {
    %c0_i32 = arith.constant 0 : i32
    %c0_i32_0 = arith.constant 0 : i32
    return %arg0, %c0_i32 : i32, i32
  }
  func.func @transform_6(%arg0: i32) -> (i32, i32, i32) {
    %c0_i32 = arith.constant 0 : i32
    %c0_i32_0 = arith.constant 0 : i32
    %c0_i32_1 = arith.constant 0 : i32
    return %arg0, %c0_i32, %c0_i32_0 : i32, i32, i32
  }
  func.func @transform_7(%arg0: i32) -> (i32, i32, i32) {
    %c0_i32 = arith.constant 0 : i32
    %c0_i32_0 = arith.constant 0 : i32
    %c0_i32_1 = arith.constant 0 : i32
    return %arg0, %c0_i32, %c0_i32_0 : i32, i32, i32
  }
}

module attributes {stable_mosaic.version = 11 : i64} {
  func.func @_supcon2_kernel(%arg0: i32, %arg1: memref<1x16xi32, #tpu.memory_space<vmem>>, %arg2: memref<16x32xf32, #tpu.memory_space<vmem>>, %arg3: memref<8x32xf32, #tpu.memory_space<vmem>>, %arg4: memref<8x32xf32, #tpu.memory_space<vmem>>, %arg5: memref<8x1xi32, #tpu.memory_space<vmem>>, %arg6: memref<8x1xf32, #tpu.memory_space<vmem>>, %arg7: memref<1x1x1xf32, #tpu.memory_space<vmem>>, %arg8: memref<1x1x1xf32, #tpu.memory_space<vmem>>) attributes {dimension_semantics = [#tpu.dimension_semantics<parallel>], iteration_bounds = array<i64: 2>, scalar_prefetch = 0 : i64, scratch_operands = 0 : i64, tpu.core_type = #tpu.core_type<tc>, window_params = [{pipeline_mode = #tpu.pipeline_mode<synchronous>, transform_indices = @transform_0, window_bounds = array<i64: 1, 16>}, {pipeline_mode = #tpu.pipeline_mode<synchronous>, transform_indices = @transform_1, window_bounds = array<i64: 16, 32>}, {transform_indices = @transform_2, window_bounds = array<i64: 8, 32>}, {transform_indices = @transform_3, window_bounds = array<i64: 8, 32>}, {transform_indices = @transform_4, window_bounds = array<i64: 8, 1>}, {transform_indices = @transform_5, window_bounds = array<i64: 8, 1>}, {transform_indices = @transform_6, window_bounds = array<i64: 1, 1, 1>}, {transform_indices = @transform_7, window_bounds = array<i64: 1, 1, 1>}]} {
    %c0 = arith.constant 0 : index
    %c0_0 = arith.constant 0 : index
    %0 = vector.load %arg3[%c0, %c0_0] : memref<8x32xf32, #tpu.memory_space<vmem>>, vector<8x32xf32>
    %1 = arith.mulf %0, %0 : vector<8x32xf32>
    %cst = arith.constant dense<0.000000e+00> : vector<8xf32>
    %2 = vector.multi_reduction <add>, %1, %cst [1] : vector<8x32xf32> to vector<8xf32>
    %3 = vector.shape_cast %2 : vector<8xf32> to vector<8x1xf32>
    %cst_1 = arith.constant 1.000000e-24 : f32
    %4 = vector.broadcast %cst_1 : f32 to vector<8x1xf32>
    %5 = arith.maximumf %3, %4 : vector<8x1xf32>
    %6 = math.rsqrt %5 : vector<8x1xf32>
    %7 = vector.broadcast %6 : vector<8x1xf32> to vector<8x32xf32>
    %8 = arith.mulf %0, %7 : vector<8x32xf32>
    %cst_2 = arith.constant 2.000000e+00 : f32
    %9 = vector.broadcast %cst_2 : f32 to vector<8x32xf32>
    %10 = arith.mulf %8, %9 : vector<8x32xf32>
    %c0_3 = arith.constant 0 : index
    %c0_4 = arith.constant 0 : index
    %11 = vector.load %arg4[%c0_3, %c0_4] : memref<8x32xf32, #tpu.memory_space<vmem>>, vector<8x32xf32>
    %cst_5 = arith.constant 2.000000e+00 : f32
    %12 = vector.broadcast %cst_5 : f32 to vector<8x32xf32>
    %13 = arith.mulf %11, %12 : vector<8x32xf32>
    %c0_6 = arith.constant 0 : index
    %c0_7 = arith.constant 0 : index
    %14 = vector.load %arg2[%c0_6, %c0_7] : memref<16x32xf32, #tpu.memory_space<vmem>>, vector<16x32xf32>
    %cst_8 = arith.constant dense<0.000000e+00> : vector<8x16xf32>
    %15 = tpu.matmul %13, %14, %cst_8 {dimension_numbers = #tpu.dot_dimension_numbers<[1], [1], [0], [0], [0, 0, 1, 0], [], []>} : vector<8x32xf32>, vector<16x32xf32>, vector<8x16xf32> -> vector<8x16xf32>
    %c8_i32 = arith.constant 8 : i32
    %16 = arith.muli %arg0, %c8_i32 : i32
    %17 = tpu.assume_multiple %16, 8 : i32
    %18 = tpu.iota {dimensions = array<i32: 0>} : vector<8x16xi32>
    %19 = vector.broadcast %17 : i32 to vector<8x16xi32>
    %20 = arith.addi %18, %19 : vector<8x16xi32>
    %21 = tpu.iota {dimensions = array<i32: 1>} : vector<8x16xi32>
    %22 = arith.cmpi eq, %20, %21 : vector<8x16xi32>
    %cst_9 = arith.constant dense<0xFF800000> : vector<8xf32>
    %23 = vector.multi_reduction <maximumf>, %15, %cst_9 [1] : vector<8x16xf32> to vector<8xf32>
    %24 = vector.shape_cast %23 : vector<8xf32> to vector<8x1xf32>
    %25 = vector.broadcast %24 : vector<8x1xf32> to vector<8x16xf32>
    %26 = arith.subf %15, %25 : vector<8x16xf32>
    %27 = math.exp %26 : vector<8x16xf32>
    %cst_10 = arith.constant 0.000000e+00 : f32
    %28 = vector.broadcast %cst_10 : f32 to vector<8x16xf32>
    %29 = arith.select %22, %28, %27 : vector<8x16xi1>, vector<8x16xf32>
    %cst_11 = arith.constant dense<0.000000e+00> : vector<8xf32>
    %30 = vector.multi_reduction <add>, %29, %cst_11 [1] : vector<8x16xf32> to vector<8xf32>
    %31 = vector.shape_cast %30 : vector<8xf32> to vector<8x1xf32>
    %32 = math.log %31 : vector<8x1xf32>
    %cst_12 = arith.constant dense<0.000000e+00> : vector<8x16xf32>
    %33 = tpu.matmul %10, %14, %cst_12 {dimension_numbers = #tpu.dot_dimension_numbers<[1], [1], [0], [0], [0, 0, 1, 0], [], []>} : vector<8x32xf32>, vector<16x32xf32>, vector<8x16xf32> -> vector<8x16xf32>
    %cst_13 = arith.constant dense<0xFF800000> : vector<8xf32>
    %34 = vector.multi_reduction <maximumf>, %33, %cst_13 [1] : vector<8x16xf32> to vector<8xf32>
    %35 = vector.shape_cast %34 : vector<8xf32> to vector<8x1xf32>
    %36 = vector.broadcast %35 : vector<8x1xf32> to vector<8x16xf32>
    %37 = arith.subf %33, %36 : vector<8x16xf32>
    %c0_14 = arith.constant 0 : index
    %c0_15 = arith.constant 0 : index
    %38 = vector.load %arg5[%c0_14, %c0_15] : memref<8x1xi32, #tpu.memory_space<vmem>>, vector<8x1xi32>
    %c0_16 = arith.constant 0 : index
    %c0_17 = arith.constant 0 : index
    %39 = vector.load %arg1[%c0_16, %c0_17] : memref<1x16xi32, #tpu.memory_space<vmem>>, vector<1x16xi32>
    %40 = vector.broadcast %38 : vector<8x1xi32> to vector<8x16xi32>
    %41 = vector.broadcast %39 : vector<1x16xi32> to vector<8x16xi32>
    %42 = arith.cmpi eq, %40, %41 : vector<8x16xi32>
    %cst_18 = arith.constant 0.000000e+00 : f32
    %43 = vector.broadcast %cst_18 : f32 to vector<8x16xf32>
    %44 = arith.select %42, %37, %43 : vector<8x16xi1>, vector<8x16xf32>
    %cst_19 = arith.constant dense<0.000000e+00> : vector<8xf32>
    %45 = vector.multi_reduction <add>, %44, %cst_19 [1] : vector<8x16xf32> to vector<8xf32>
    %46 = vector.shape_cast %45 : vector<8xf32> to vector<8x1xf32>
    %c0_20 = arith.constant 0 : index
    %c0_21 = arith.constant 0 : index
    %47 = vector.load %arg6[%c0_20, %c0_21] : memref<8x1xf32, #tpu.memory_space<vmem>>, vector<8x1xf32>
    %cst_22 = arith.constant 0.000000e+00 : f32
    %48 = vector.broadcast %cst_22 : f32 to vector<8x1xf32>
    %49 = arith.cmpf ogt, %47, %48 : vector<8x1xf32>
    %cst_23 = arith.constant 1.000000e+00 : f32
    %50 = vector.broadcast %cst_23 : f32 to vector<8x1xf32>
    %51 = arith.select %49, %47, %50 : vector<8x1xi1>, vector<8x1xf32>
    %52 = arith.divf %46, %51 : vector<8x1xf32>
    %53 = arith.subf %52, %32 : vector<8x1xf32>
    %cst_24 = arith.constant 0.000000e+00 : f32
    %54 = vector.broadcast %cst_24 : f32 to vector<8x1xf32>
    %55 = arith.select %49, %53, %54 : vector<8x1xi1>, vector<8x1xf32>
    %cst_25 = arith.constant dense<0.000000e+00> : vector<1xf32>
    %56 = vector.multi_reduction <add>, %55, %cst_25 [0] : vector<8x1xf32> to vector<1xf32>
    %57 = vector.shape_cast %56 : vector<1xf32> to vector<1x1xf32>
    %58 = vector.shape_cast %57 : vector<1x1xf32> to vector<1x1x1xf32>
    %c0_26 = arith.constant 0 : index
    %c0_27 = arith.constant 0 : index
    %c0_28 = arith.constant 0 : index
    %59 = vector.load %arg7[%c0_26, %c0_27, %c0_28] : memref<1x1x1xf32, #tpu.memory_space<vmem>>, vector<1x1x1xf32>
    tpu.vector_store %arg7[%c0_26, %c0_27, %c0_28], %58 {strides = array<i32>} : memref<1x1x1xf32, #tpu.memory_space<vmem>>, vector<1x1x1xf32>,
    %60 = arith.extui %49 : vector<8x1xi1> to vector<8x1xi32>
    %61 = arith.sitofp %60 : vector<8x1xi32> to vector<8x1xf32>
    %cst_29 = arith.constant dense<0.000000e+00> : vector<1xf32>
    %62 = vector.multi_reduction <add>, %61, %cst_29 [0] : vector<8x1xf32> to vector<1xf32>
    %63 = vector.shape_cast %62 : vector<1xf32> to vector<1x1xf32>
    %64 = vector.shape_cast %63 : vector<1x1xf32> to vector<1x1x1xf32>
    %c0_30 = arith.constant 0 : index
    %c0_31 = arith.constant 0 : index
    %c0_32 = arith.constant 0 : index
    %65 = vector.load %arg8[%c0_30, %c0_31, %c0_32] : memref<1x1x1xf32, #tpu.memory_space<vmem>>, vector<1x1x1xf32>
    tpu.vector_store %arg8[%c0_30, %c0_31, %c0_32], %64 {strides = array<i32>} : memref<1x1x1xf32, #tpu.memory_space<vmem>>, vector<1x1x1xf32>,
    return
  }
  func.func @transform_0(%arg0: i32) -> (i32, i32) {
    %c0_i32 = arith.constant 0 : i32
    %c0_i32_0 = arith.constant 0 : i32
    %c0_i32_1 = arith.constant 0 : i32
    return %c0_i32, %c0_i32_0 : i32, i32
  }
  func.func @transform_1(%arg0: i32) -> (i32, i32) {
    %c0_i32 = arith.constant 0 : i32
    %c0_i32_0 = arith.constant 0 : i32
    %c0_i32_1 = arith.constant 0 : i32
    return %c0_i32, %c0_i32_0 : i32, i32
  }
  func.func @transform_2(%arg0: i32) -> (i32, i32) {
    %c0_i32 = arith.constant 0 : i32
    %c0_i32_0 = arith.constant 0 : i32
    return %arg0, %c0_i32 : i32, i32
  }
  func.func @transform_3(%arg0: i32) -> (i32, i32) {
    %c0_i32 = arith.constant 0 : i32
    %c0_i32_0 = arith.constant 0 : i32
    return %arg0, %c0_i32 : i32, i32
  }
  func.func @transform_4(%arg0: i32) -> (i32, i32) {
    %c0_i32 = arith.constant 0 : i32
    %c0_i32_0 = arith.constant 0 : i32
    return %arg0, %c0_i32 : i32, i32
  }
  func.func @transform_5(%arg0: i32) -> (i32, i32) {
    %c0_i32 = arith.constant 0 : i32
    %c0_i32_0 = arith.constant 0 : i32
    return %arg0, %c0_i32 : i32, i32
  }
  func.func @transform_6(%arg0: i32) -> (i32, i32, i32) {
    %c0_i32 = arith.constant 0 : i32
    %c0_i32_0 = arith.constant 0 : i32
    %c0_i32_1 = arith.constant 0 : i32
    return %arg0, %c0_i32, %c0_i32_0 : i32, i32, i32
  }
  func.func @transform_7(%arg0: i32) -> (i32, i32, i32) {
    %c0_i32 = arith.constant 0 : i32
    %c0_i32_0 = arith.constant 0 : i32
    %c0_i32_1 = arith.constant 0 : i32
    return %arg0, %c0_i32, %c0_i32_0 : i32, i32, i32
  }
}

</mosaic_0001>

<llo_original>
// kernel: tpu_custom_call.1
$region0: #{tpu_custom_call.1}
  #allocation0 [shape = 'u32[]', space=smem, size = 0x4, offset = 0x4, fixed_abs, tag = 'smem constant byte address 0x4 - core index']
  #allocation1 [shape = 'u32[72,128]{1,0:T(1,128)}', space=vmem, size = 0x9000, scoped, tag = 'internal scratch']
  %s0 = inlined_call_operand.vmem [shape: s32[1,16], index: 0, kind: input, shape index: {}]
  %s1 = inlined_call_operand.vmem [shape: f32[16,32], index: 1, kind: input, shape index: {}]
  %s2 = inlined_call_operand.vmem [shape: f32[16,32], index: 2, kind: input, shape index: {}]
  %s3 = inlined_call_operand.hbm [shape: f32[16,32], index: 3, kind: input, shape index: {}]
  %s4 = inlined_call_operand.vmem [shape: s32[16,1], index: 4, kind: input, shape index: {}]
  %s5 = inlined_call_operand.vmem [shape: f32[16,1], index: 5, kind: input, shape index: {}]
  %s6 = inlined_call_operand.vmem [shape: f32[2,1,1], index: 6, kind: output, shape index: {0}]
  %s7 = inlined_call_operand.vmem [shape: f32[2,1,1], index: 7, kind: output, shape index: {1}]
  %8 = xla_tuple %s6, %s7
  %s9 = sld [smem:[#allocation0]]
  $region69: #{tpu_custom_call.1} parent=0
    _
  %s11 = ssub.s32 1, %s9
  %s12 = scalar_select 0, %s11, %s9
  $region1: #{tpu_custom_call.1} parent=0
    #allocation2 [shape = 'u8[8192]{0}', space=vmem, size = 0x2000, scoped, tag = 'input window, operand 3']
    #allocation3 [shape = 's32[2]{0}', space=sflag, size = 0x8, scoped, tag = 'scoped memory for tpu_custom_call.1']
    %13 = vsyncpa [#allocation3], 0
    %s14 = scalar_lea.sflag [#allocation3], 1
    %15 = vsyncpa %s14, 0
    loop: start=0, step=1, limit=4
    $region2: #{tpu_custom_call.1} parent=1 // loop_pre_header
      _
    $region3: #{tpu_custom_call.1} parent=1 // loop_header
      %s17 = sphi 0, %s21
      %p18 = scmp.ge.s32.totalorder %s17, 4
      %s25 = sphi 0, %s25
      %s27 = sphi 0, %s25
      %s28 = sphi 0, %s27
      %s42 = sphi 0, %s28
      %s46 = sphi 0, %s46
      %s48 = sphi 0, %s46
      %s49 = sphi 0, %s48
      %s63 = sphi 0, %s49
      %s69 = sphi 0, %s71
      %s72 = sphi 0, %s69
      %s73 = sphi 0, %s72
      %s89 = sphi 0, %s73
      %s95 = sphi 0, %s97
      %s98 = sphi 0, %s95
      %s99 = sphi 0, %s98
      %s115 = sphi 0, %s99
      %s121 = sphi 0, %s123
      %s124 = sphi 0, %s121
      %s125 = sphi 0, %s124
      %s141 = sphi 0, %s125
      %s147 = sphi 0, %s149
      %s150 = sphi 0, %s147
      %s151 = sphi 0, %s150
      %s167 = sphi 0, %s151
      %s173 = sphi 0, %s175
      %s176 = sphi 0, %s173
      %s177 = sphi 0, %s176
      %s193 = sphi 0, %s177
      %s199 = sphi 0, %s201
      %s202 = sphi 0, %s199
      %s203 = sphi 0, %s202
      %s219 = sphi 0, %s203
    $region4: #{tpu_custom_call.1} parent=1 // loop_header_branch
      %20 = sbr.rel (%p18) target = $region8
    $region5: #{tpu_custom_call.1} parent=1 // loop_body
      %s22 = ssub.s32 %s17, 1
      %s23 = ssub.s32 %s17, 2
      %s24 = sadd.s32 %s17, 1
      %s26 = sadd.s32 %s25, 1
      %p29 = scmp.eq.s32.totalorder %s17, 1
      %p30 = scmp.ne.s32.totalorder %s25, %s27
      %p31 = scmp.eq.s32.totalorder %s17, 0
      %p32 = por %p30, %p31
      %p33 = scmp.ne.s32.totalorder %s25, %s27
      %p34 = scmp.eq.s32.totalorder %s22, 1
      %p35 = por %p33, %p34
      %p36 = scmp.ne.s32.totalorder %s27, %s28
      %p37 = scmp.eq.s32.totalorder %s22, 0
      %p38 = por %p36, %p37
      %p39 = scmp.ne.s32.totalorder %s27, %s28
      %p40 = scmp.eq.s32.totalorder %s23, 1
      %p41 = por %p39, %p40
      %p43 = scmp.ne.s32.totalorder %s28, %s42
      %p44 = scmp.eq.s32.totalorder %s23, 0
      %p45 = por %p43, %p44
      %s47 = sadd.s32 %s46, 1
      %p50 = scmp.eq.s32.totalorder %s17, 1
      %p51 = scmp.ne.s32.totalorder %s46, %s48
      %p52 = scmp.eq.s32.totalorder %s17, 0
      %p53 = por %p51, %p52
      %p54 = scmp.ne.s32.totalorder %s46, %s48
      %p55 = scmp.eq.s32.totalorder %s22, 1
      %p56 = por %p54, %p55
      %p57 = scmp.ne.s32.totalorder %s48, %s49
      %p58 = scmp.eq.s32.totalorder %s22, 0
      %p59 = por %p57, %p58
      %p60 = scmp.ne.s32.totalorder %s48, %s49
      %p61 = scmp.eq.s32.totalorder %s23, 1
      %p62 = por %p60, %p61
      %p64 = scmp.ne.s32.totalorder %s49, %s63
      %p65 = scmp.eq.s32.totalorder %s23, 0
      %p66 = por %p64, %p65
      %s67 = ssub.s32 %s17, %s24
      %p68 = scmp.eq.s32.totalorder %s67, 0
      %s70 = sadd.s32 %s69, 1
      %s71 = scalar_select %p68, %s69, %s70
      %p74 = pneg %p68
      %p75 = scmp.eq.s32.totalorder %s17, 1
      %p76 = por %p74, %p75
      %p77 = scmp.ne.s32.totalorder %s69, %s72
      %p78 = scmp.eq.s32.totalorder %s17, 0
      %p79 = por %p77, %p78
      %p80 = scmp.ne.s32.totalorder %s69, %s72
      %p81 = scmp.eq.s32.totalorder %s22, 1
      %p82 = por %p80, %p81
      %p83 = scmp.ne.s32.totalorder %s72, %s73
      %p84 = scmp.eq.s32.totalorder %s22, 0
      %p85 = por %p83, %p84
      %p86 = scmp.ne.s32.totalorder %s72, %s73
      %p87 = scmp.eq.s32.totalorder %s23, 1
      %p88 = por %p86, %p87
      %p90 = scmp.ne.s32.totalorder %s73, %s89
      %p91 = scmp.eq.s32.totalorder %s23, 0
      %p92 = por %p90, %p91
      %s93 = ssub.s32 %s17, %s24
      %p94 = scmp.eq.s32.totalorder %s93, 0
      %s96 = sadd.s32 %s95, 1
      %s97 = scalar_select %p94, %s95, %s96
      %p100 = pneg %p94
      %p101 = scmp.eq.s32.totalorder %s17, 1
      %p102 = por %p100, %p101
      %p103 = scmp.ne.s32.totalorder %s95, %s98
      %p104 = scmp.eq.s32.totalorder %s17, 0
      %p105 = por %p103, %p104
      %p106 = scmp.ne.s32.totalorder %s95, %s98
      %p107 = scmp.eq.s32.totalorder %s22, 1
      %p108 = por %p106, %p107
      %p109 = scmp.ne.s32.totalorder %s98, %s99
      %p110 = scmp.eq.s32.totalorder %s22, 0
      %p111 = por %p109, %p110
      %p112 = scmp.ne.s32.totalorder %s98, %s99
      %p113 = scmp.eq.s32.totalorder %s23, 1
      %p114 = por %p112, %p113
      %p116 = scmp.ne.s32.totalorder %s99, %s115
      %p117 = scmp.eq.s32.totalorder %s23, 0
      %p118 = por %p116, %p117
      %s119 = ssub.s32 %s17, %s24
      %p120 = scmp.eq.s32.totalorder %s119, 0
      %s122 = sadd.s32 %s121, 1
      %s123 = scalar_select %p120, %s121, %s122
      %p126 = pneg %p120
      %p127 = scmp.eq.s32.totalorder %s17, 1
      %p128 = por %p126, %p127
      %p129 = scmp.ne.s32.totalorder %s121, %s124
      %p130 = scmp.eq.s32.totalorder %s17, 0
      %p131 = por %p129, %p130
      %p132 = scmp.ne.s32.totalorder %s121, %s124
      %p133 = scmp.eq.s32.totalorder %s22, 1
      %p134 = por %p132, %p133
      %p135 = scmp.ne.s32.totalorder %s124, %s125
      %p136 = scmp.eq.s32.totalorder %s22, 0
      %p137 = por %p135, %p136
      %p138 = scmp.ne.s32.totalorder %s124, %s125
      %p139 = scmp.eq.s32.totalorder %s23, 1
      %p140 = por %p138, %p139
      %p142 = scmp.ne.s32.totalorder %s125, %s141
      %p143 = scmp.eq.s32.totalorder %s23, 0
      %p144 = por %p142, %p143
      %s145 = ssub.s32 %s17, %s24
      %p146 = scmp.eq.s32.totalorder %s145, 0
      %s148 = sadd.s32 %s147, 1
      %s149 = scalar_select %p146, %s147, %s148
      %p152 = pneg %p146
      %p153 = scmp.eq.s32.totalorder %s17, 1
      %p154 = por %p152, %p153
      %p155 = scmp.ne.s32.totalorder %s147, %s150
      %p156 = scmp.eq.s32.totalorder %s17, 0
      %p157 = por %p155, %p156
      %p158 = scmp.ne.s32.totalorder %s147, %s150
      %p159 = scmp.eq.s32.totalorder %s22, 1
      %p160 = por %p158, %p159
      %p161 = scmp.ne.s32.totalorder %s150, %s151
      %p162 = scmp.eq.s32.totalorder %s22, 0
      %p163 = por %p161, %p162
      %p164 = scmp.ne.s32.totalorder %s150, %s151
      %p165 = scmp.eq.s32.totalorder %s23, 1
      %p166 = por %p164, %p165
      %p168 = scmp.ne.s32.totalorder %s151, %s167
      %p169 = scmp.eq.s32.totalorder %s23, 0
      %p170 = por %p168, %p169
      %s171 = ssub.s32 %s17, %s24
      %p172 = scmp.eq.s32.totalorder %s171, 0
      %s174 = sadd.s32 %s173, 1
      %s175 = scalar_select %p172, %s173, %s174
      %p178 = pneg %p172
      %p179 = scmp.eq.s32.totalorder %s17, 1
      %p180 = por %p178, %p179
      %p181 = scmp.ne.s32.totalorder %s173, %s176
      %p182 = scmp.eq.s32.totalorder %s17, 0
      %p183 = por %p181, %p182
      %p184 = scmp.ne.s32.totalorder %s173, %s176
      %p185 = scmp.eq.s32.totalorder %s22, 1
      %p186 = por %p184, %p185
      %p187 = scmp.ne.s32.totalorder %s176, %s177
      %p188 = scmp.eq.s32.totalorder %s22, 0
      %p189 = por %p187, %p188
      %p190 = scmp.ne.s32.totalorder %s176, %s177
      %p191 = scmp.eq.s32.totalorder %s23, 1
      %p192 = por %p190, %p191
      %p194 = scmp.ne.s32.totalorder %s177, %s193
      %p195 = scmp.eq.s32.totalorder %s23, 0
      %p196 = por %p194, %p195
      %s197 = ssub.s32 %s17, %s24
      %p198 = scmp.eq.s32.totalorder %s197, 0
      %s200 = sadd.s32 %s199, 1
      %s201 = scalar_select %p198, %s199, %s200
      %p204 = pneg %p198
      %p205 = scmp.eq.s32.totalorder %s17, 1
      %p206 = por %p204, %p205
      %p207 = scmp.ne.s32.totalorder %s199, %s202
      %p208 = scmp.eq.s32.totalorder %s17, 0
      %p209 = por %p207, %p208
      %p210 = scmp.ne.s32.totalorder %s199, %s202
      %p211 = scmp.eq.s32.totalorder %s22, 1
      %p212 = por %p210, %p211
      %p213 = scmp.ne.s32.totalorder %s202, %s203
      %p214 = scmp.eq.s32.totalorder %s22, 0
      %p215 = por %p213, %p214
      %p216 = scmp.ne.s32.totalorder %s202, %s203
      %p217 = scmp.eq.s32.totalorder %s23, 1
      %p218 = por %p216, %p217
      %p220 = scmp.ne.s32.totalorder %s203, %s219
      %p221 = scmp.eq.s32.totalorder %s23, 0
      %p222 = por %p220, %p221
      %p223 = scmp.le.s32.totalorder 1, %s17
      %p224 = scmp.lt.s32.totalorder %s17, 3
      %p225 = pnand %p223, %p224
      %p226 = pneg %p225
      // Predicated region
      $region9: #{tpu_custom_call.1} parent=5 // pred_check
        _
      $region10: #{tpu_custom_call.1} parent=5 // pred_check_branch
        %228 = sbr.rel (%p225) target = $region12
      $region11: #{tpu_custom_call.1} parent=5 // pred_region
        %s229 = ssub.s32 %s17, 1
        // Predicated region
        $region13: #{tpu_custom_call.1} parent=11 // pred_check
          %p230 = pneg %p38
        $region14: #{tpu_custom_call.1} parent=11 // pred_check_branch
          %232 = sbr.rel (%p230) target = $region16
        $region15: #{tpu_custom_call.1} parent=11 // pred_region
          _
        $region16: #{tpu_custom_call.1} parent=11 // pred_fallthru
          _
        // Predicated region
        $region17: #{tpu_custom_call.1} parent=11 // pred_check
          %p233 = pneg %p59
        $region18: #{tpu_custom_call.1} parent=11 // pred_check_branch
          %235 = sbr.rel (%p233) target = $region20
        $region19: #{tpu_custom_call.1} parent=11 // pred_region
          _
        $region20: #{tpu_custom_call.1} parent=11 // pred_fallthru
          _
      $region12: #{tpu_custom_call.1} parent=5 // pred_fallthru
        _
      %p236 = scmp.lt.s32.totalorder %s17, 2
      // Predicated region
      $region21: #{tpu_custom_call.1} parent=5 // pred_check
        %p237 = pneg %p236
      $region22: #{tpu_custom_call.1} parent=5 // pred_check_branch
        %239 = sbr.rel (%p237) target = $region24
      $region23: #{tpu_custom_call.1} parent=5 // pred_region
        // Predicated region
        $region25: #{tpu_custom_call.1} parent=23 // pred_check
          %p240 = pneg %p79
        $region26: #{tpu_custom_call.1} parent=23 // pred_check_branch
          %242 = sbr.rel (%p240) target = $region28
        $region27: #{tpu_custom_call.1} parent=23 // pred_region
          %p243 = scmp.lt.s32.totalorder %s17, 1
          %s244 = scalar_select %p243, %s17, 1
          %s245 = smul.addr %s244, 8
          %s246 = scalar_lea.vmem %s2, %s245
        $region28: #{tpu_custom_call.1} parent=23 // pred_fallthru
          _
        // Predicated region
        $region29: #{tpu_custom_call.1} parent=23 // pred_check
          %p247 = pneg %p105
        $region30: #{tpu_custom_call.1} parent=23 // pred_check_branch
          %249 = sbr.rel (%p247) target = $region32
        $region31: #{tpu_custom_call.1} parent=23 // pred_region
          %s250 = sand.u32 %s95, 1
          %s251 = scalar_lea.sflag [#allocation3], %s250
          %s252 = sand.u32 %s95, 1
          %s253 = smul.addr %s252, 8
          %s254 = scalar_lea.vmem [#allocation2], %s253
          %256 = vsyncadd %s251, 0
          %s257 = smul.addr %s17, 8
          %s258 = scalar_lea.hbm %s3, %s257
          %s260 = sshll.u32 %s258, 4
          %s261 = int_to_ptr.hbm [resolvable:$true] %s260
          %s262 = sshll.u32 %s254, 4
          %s263 = int_to_ptr.vmem [resolvable:$true] %s262
          %265 = dma.hbm_to_vmem [thread:$0]  %s261, 128, %s263, %s251
        $region32: #{tpu_custom_call.1} parent=23 // pred_fallthru
          _
        // Predicated region
        $region33: #{tpu_custom_call.1} parent=23 // pred_check
          %p266 = pneg %p131
        $region34: #{tpu_custom_call.1} parent=23 // pred_check_branch
          %268 = sbr.rel (%p266) target = $region36
        $region35: #{tpu_custom_call.1} parent=23 // pred_region
          %p269 = scmp.lt.s32.totalorder %s17, 1
          %s270 = scalar_select %p269, %s17, 1
          %s271 = smul.addr %s270, 8
          %s272 = scalar_lea.vmem %s4, %s271
        $region36: #{tpu_custom_call.1} parent=23 // pred_fallthru
          _
        // Predicated region
        $region37: #{tpu_custom_call.1} parent=23 // pred_check
          %p273 = pneg %p157
        $region38: #{tpu_custom_call.1} parent=23 // pred_check_branch
          %275 = sbr.rel (%p273) target = $region40
        $region39: #{tpu_custom_call.1} parent=23 // pred_region
          %p276 = scmp.lt.s32.totalorder %s17, 1
          %s277 = scalar_select %p276, %s17, 1
          %s278 = smul.addr %s277, 8
          %s279 = scalar_lea.vmem %s5, %s278
        $region40: #{tpu_custom_call.1} parent=23 // pred_fallthru
          _
      $region24: #{tpu_custom_call.1} parent=5 // pred_fallthru
        _
      %p280 = scmp.le.s32.totalorder 1, %s17
      %p281 = scmp.lt.s32.totalorder %s17, 3
      %p282 = pnand %p280, %p281
      %p283 = pneg %p282
      // Predicated region
      $region41: #{tpu_custom_call.1} parent=5 // pred_check
        _
      $region42: #{tpu_custom_call.1} parent=5 // pred_check_branch
        %285 = sbr.rel (%p282) target = $region44
      $region43: #{tpu_custom_call.1} parent=5 // pred_region
        %s286 = ssub.s32 %s17, 1
        %s287 = sand.u32 %s98, 1
        %s288 = scalar_lea.sflag [#allocation3], %s287
        %s289 = sand.u32 %s98, 1
        %s290 = smul.addr %s289, 8
        %s291 = scalar_lea.vmem [#allocation2], %s290
        // Predicated region
        $region45: #{tpu_custom_call.1} parent=43 // pred_check
          %p292 = pneg %p111
        $region46: #{tpu_custom_call.1} parent=43 // pred_check_branch
          %294 = sbr.rel (%p292) target = $region48
        $region47: #{tpu_custom_call.1} parent=43 // pred_region
          %296 = dma.done %s288, 128
        $region48: #{tpu_custom_call.1} parent=43 // pred_fallthru
          _
        %p297 = pneg %p38
        %p298 = pneg %p35
        %p299 = pneg %p59
        %p300 = pneg %p56
        %p301 = scmp.lt.s32.totalorder %s22, 1
        %s302 = scalar_select %p301, %s22, 1
        %s303 = smul.addr %s302, 8
        %s304 = scalar_lea.vmem %s2, %s303
        %p305 = pneg %p85
        %p306 = pneg %p82
        %s307 = sand.u32 %s98, 1
        %s308 = scalar_lea.sflag [#allocation3], %s307
        %s309 = sand.u32 %s98, 1
        %s310 = smul.addr %s309, 8
        %s311 = scalar_lea.vmem [#allocation2], %s310
        %p312 = pneg %p111
        %p313 = pneg %p108
        %p314 = scmp.lt.s32.totalorder %s22, 1
        %s315 = scalar_select %p314, %s22, 1
        %s316 = smul.addr %s315, 8
        %s317 = scalar_lea.vmem %s4, %s316
        %p318 = pneg %p137
        %p319 = pneg %p134
        %p320 = scmp.lt.s32.totalorder %s22, 1
        %s321 = scalar_select %p320, %s22, 1
        %s322 = smul.addr %s321, 8
        %s323 = scalar_lea.vmem %s5, %s322
        %p324 = pneg %p163
        %p325 = pneg %p160
        %p326 = pneg %p189
        %p327 = pneg %p186
        %p328 = scmp.lt.s32.totalorder %s22, 1
        %s329 = scalar_select %p328, %s22, 1
        %s330 = scalar_lea.vmem %s6, %s329
        %p331 = pneg %p215
        %p332 = pneg %p212
        %p333 = scmp.lt.s32.totalorder %s22, 1
        %s334 = scalar_select %p333, %s22, 1
        %s335 = scalar_lea.vmem %s7, %s334
        %p336 = scmp.lt.s32.totalorder %s22, 1
        %s337 = scalar_select %p336, %s22, 1
        %s338 = smul.addr %s337, 8
        %s339 = scalar_lea.vmem %s2, %s338
        %p340 = scmp.lt.s32.totalorder %s22, 1
        %s341 = scalar_select %p340, %s22, 1
        %s342 = smul.addr %s341, 8
        %s343 = scalar_lea.vmem %s4, %s342
        %p344 = scmp.lt.s32.totalorder %s22, 1
        %s345 = scalar_select %p344, %s22, 1
        %s346 = smul.addr %s345, 8
        %s347 = scalar_lea.vmem %s5, %s346
        %p348 = scmp.lt.s32.totalorder %s22, 1
        %s349 = scalar_select %p348, %s22, 1
        %s350 = scalar_lea.vmem %s6, %s349
        %p351 = scmp.lt.s32.totalorder %s22, 1
        %s352 = scalar_select %p351, %s22, 1
        %s353 = scalar_lea.vmem %s7, %s352
        %v354 = vld [vmem:[%s339] sm:$0xff]
        %v355 = vmul.f32 %v354, %v354
        %vm356 = vcmask 261120
        %v357 = vsel %vm356, %v355, 0.0
        %358 = vadd.xlane.f32.xlu0 %v357
        %v359 = vpop.xlane.xlu0 %358
        %v360 = vmax.f32 %v359, 1e-24
        %v361 = vrsqrt.pop %v360
        %v362 = vmul.f32 %v361, %v360
        %v363 = vmul.f32 %v362, %v361
        %v364 = vmul.f32 0.5, %v363
        %v365 = vsub.f32 1.5, %v364
        %v366 = vmul.f32 %v361, %v365
        %vm367 = vweird.f32 %v360
        %vm368 = vweird.f32 %v361
        %vm369 = vmor %vm367, %vm368
        %v370 = vsel %vm369, %v361, %v366
        %v371 = vmul.f32 %v354, %v370
        %v372 = vmul.f32 %v371, 2.0
        %v373 = vld [vmem:[%s291] sm:$0xff]
        %v374 = vmul.f32 %v373, 2.0
        %v375 = vld [vmem:[%s1] sm:$0xff]
        %v376 = vld [vmem:[%s1 + $0x8] sm:$0xff]
        %v378 = vsel %vm356, %v374, 0
        %v381 = vsel %vm356, %v375, 0
        %v384 = vsel %vm356, %v376, 0
        %386 = vmatpush.xpose.msra.mxu0 0.0
        %387 = vmatpush.xpose.msra.mxu0 0.0
        %388 = vmatpush.xpose.msra.mxu0 0.0
        %389 = vmatpush.xpose.msra.mxu0 0.0
        %390 = vmatpush.xpose.msra.mxu0 0.0
        %391 = vmatpush.xpose.msra.mxu0 0.0
        %392 = vmatpush.xpose.msra.mxu0 0.0
        %393 = vmatpush.xpose.msra.mxu0 0.0
        %394 = vmatpush.xpose.msra.mxu0 0.0
        %395 = vmatpush.xpose.msra.mxu0 0.0
        %396 = vmatpush.xpose.msra.mxu0 0.0
        %397 = vmatpush.xpose.msra.mxu0 0.0
        %398 = vmatpush.xpose.msra.mxu0 0.0
        %399 = vmatpush.xpose.msra.mxu0 0.0
        %400 = vmatpush.xpose.msra.mxu0 %v384
        %401 = vmatpush.xpose.msra.mxu0 %v381
        %402 = vmatmul.f32.gmra.mxu0 %v378
        %v403 = vpop.f32.mrf.mxu0
        %v404 = vadd.f32 0.0, %v403
        %405 = vdwg.mxu0
        %s406 = smul.u32 %s22, 8
        %v407 = vlaneseq
        %v408 = vshrl.u32 %v407, 7
        %v409 = vstv %s406
        %v410 = vadd.s32 %v408, %v409
        %v411 = vlaneseq
        %v412 = vand.u32 %v411, 127
        %vm413 = vcmp.eq.s32.totalorder %v410, %v412
        %vm414 = vcmask 130048
        %v415 = vsel %vm414, %v404, -inf
        %416 = vmax.xlane.f32.xlu0 %v415
        %v417 = vpop.xlane.xlu0 %416
        %v418 = vsub.f32 %v404, %v417
        %v419 = vmul.f32 %v418, 1.442695
        %v420 = vpow.pop %v419
        %v421 = vsel %vm413, 0.0, %v420
        %v422 = vsel %vm414, %v421, 0.0
        %423 = vadd.xlane.f32.xlu0 %v422
        %v424 = vpop.xlane.xlu0 %423
        %v425 = vlog2.pop %v424
        %v426 = vmul.f32 %v425, 0.6931472
        %v428 = vsel %vm356, %v372, 0
        %430 = vmatpush.xpose.msra.mxu0 0.0
        %431 = vmatpush.xpose.msra.mxu0 0.0
        %432 = vmatpush.xpose.msra.mxu0 0.0
        %433 = vmatpush.xpose.msra.mxu0 0.0
        %434 = vmatpush.xpose.msra.mxu0 0.0
        %435 = vmatpush.xpose.msra.mxu0 0.0
        %436 = vmatpush.xpose.msra.mxu0 0.0
        %437 = vmatpush.xpose.msra.mxu0 0.0
        %438 = vmatpush.xpose.msra.mxu0 0.0
        %439 = vmatpush.xpose.msra.mxu0 0.0
        %440 = vmatpush.xpose.msra.mxu0 0.0
        %441 = vmatpush.xpose.msra.mxu0 0.0
        %442 = vmatpush.xpose.msra.mxu0 0.0
        %443 = vmatpush.xpose.msra.mxu0 0.0
        %444 = vmatpush.xpose.msra.mxu0 %v384
        %445 = vmatpush.xpose.msra.mxu0 %v381
        %446 = vmatmul.f32.gmra.mxu0 %v428
        %v447 = vpop.f32.mrf.mxu0
        %v448 = vadd.f32 0.0, %v447
        %449 = vdwg.mxu0
        %v450 = vsel %vm414, %v448, -inf
        %451 = vmax.xlane.f32.xlu0 %v450
        %v452 = vpop.xlane.xlu0 %451
        %v453 = vsub.f32 %v448, %v452
        %v454 = vld [vmem:[%s343] sm:$0xff]
        %v455 = vld [vmem:[%s0] sm:$0x1]
        %456 = vset.pattern.permute.xlu0 0
        %457 = vperm.xlu0 %456, %v454
        %v458 = vpop.permute.xlu0 %457
        %v459 = vperm.slane %v455, 0
        %vm460 = vcmp.eq.s32.totalorder %v458, %v459
        %v461 = vsel %vm460, %v453, 0.0
        %v462 = vsel %vm414, %v461, 0.0
        %463 = vadd.xlane.f32.xlu0 %v462
        %v464 = vpop.xlane.xlu0 %463
        %v465 = vld [vmem:[%s347] sm:$0xff]
        %vm466 = vcmp.gt.f32.partialorder %v465, 0.0
        %v467 = vsel %vm466, %v465, 1.0
        %v468 = vrcp.pop %v467
        %v469 = vmul.f32 %v467, %v468
        %v470 = vsub.f32 1.0, %v469
        %v471 = vmul.f32 %v468, %v470
        %v472 = vadd.f32 %v468, %v471
        %vm473 = vweird.f32 %v467
        %vm474 = vweird.f32 %v468
        %vm475 = vmor %vm473, %vm474
        %v476 = vsel %vm475, %v468, %v472
        %v477 = vand.u32 2147483647, %v467
        %vm478 = vcmp.eq.f32.partialorder %v477, 8.507059e+37
        %v479 = vand.u32 %v467, 2147483648
        %v480 = vor.u32 1.1754944e-38, %v479
        %v481 = vsel %vm478, %v480, %v476
        %v482 = vmul.f32 %v464, %v481
        %v483 = vsub.f32 %v482, %v426
        %v484 = vsel %vm466, %v483, 0.0
        %vm485 = vcmask 7168
        %v486 = vsel %vm485, %v484, 0.0
        %v487 = vrot.slane %v486, 4
        %v488 = vadd.f32 %v486, %v487
        %v489 = vrot.slane %v488, 2
        %v490 = vadd.f32 %v488, %v489
        %v491 = vrot.slane %v490, 1
        %v492 = vadd.f32 %v490, %v491
        %vm493 = vcmask 0
        %494 = vst.msk [vmem:[%s350] sm:$0x1] %vm493, %v492
        %v495 = vsel %vm466, 1, 0
        %v496 = vcvt.s32.f32 %v495
        %v497 = vsel %vm485, %v496, 0.0
        %v498 = vrot.slane %v497, 4
        %v499 = vadd.f32 %v497, %v498
        %v500 = vrot.slane %v499, 2
        %v501 = vadd.f32 %v499, %v500
        %v502 = vrot.slane %v501, 1
        %v503 = vadd.f32 %v501, %v502
        %504 = vst.msk [vmem:[%s353] sm:$0x1] %vm493, %v503
        %p505 = scmp.lt.s32.totalorder %s22, 1
        %s506 = scalar_select %p505, %s22, 1
        %s507 = scalar_lea.vmem %s6, %s506
        %p508 = scmp.lt.s32.totalorder %s22, 1
        %s509 = scalar_select %p508, %s22, 1
        %s510 = scalar_lea.vmem %s7, %s509
        // Predicated region
        $region49: #{tpu_custom_call.1} parent=43 // pred_check
          %p511 = pneg %p186
        $region50: #{tpu_custom_call.1} parent=43 // pred_check_branch
          %513 = sbr.rel (%p511) target = $region52
        $region51: #{tpu_custom_call.1} parent=43 // pred_region
          _
        $region52: #{tpu_custom_call.1} parent=43 // pred_fallthru
          _
        // Predicated region
        $region53: #{tpu_custom_call.1} parent=43 // pred_check
          %p514 = pneg %p212
        $region54: #{tpu_custom_call.1} parent=43 // pred_check_branch
          %516 = sbr.rel (%p514) target = $region56
        $region55: #{tpu_custom_call.1} parent=43 // pred_region
          _
        $region56: #{tpu_custom_call.1} parent=43 // pred_fallthru
          _
      $region44: #{tpu_custom_call.1} parent=5 // pred_fallthru
        _
      %p517 = scmp.le.s32.totalorder 2, %s17
      // Predicated region
      $region57: #{tpu_custom_call.1} parent=5 // pred_check
        %p518 = pneg %p517
      $region58: #{tpu_custom_call.1} parent=5 // pred_check_branch
        %520 = sbr.rel (%p518) target = $region60
      $region59: #{tpu_custom_call.1} parent=5 // pred_region
        %s521 = ssub.s32 %s17, 2
        // Predicated region
        $region61: #{tpu_custom_call.1} parent=59 // pred_check
          %p522 = pneg %p192
        $region62: #{tpu_custom_call.1} parent=59 // pred_check_branch
          %524 = sbr.rel (%p522) target = $region64
        $region63: #{tpu_custom_call.1} parent=59 // pred_region
          %p525 = scmp.lt.s32.totalorder %s23, 1
          %s526 = scalar_select %p525, %s23, 1
          %s527 = scalar_lea.vmem %s6, %s526
        $region64: #{tpu_custom_call.1} parent=59 // pred_fallthru
          _
        // Predicated region
        $region65: #{tpu_custom_call.1} parent=59 // pred_check
          %p528 = pneg %p218
        $region66: #{tpu_custom_call.1} parent=59 // pred_check_branch
          %530 = sbr.rel (%p528) target = $region68
        $region67: #{tpu_custom_call.1} parent=59 // pred_region
          %p531 = scmp.lt.s32.totalorder %s23, 1
          %s532 = scalar_select %p531, %s23, 1
          %s533 = scalar_lea.vmem %s7, %s532
        $region68: #{tpu_custom_call.1} parent=59 // pred_fallthru
          _
      $region60: #{tpu_custom_call.1} parent=5 // pred_fallthru
        _
    $region6: #{tpu_custom_call.1} parent=1 // loop_footer
      %s21 = sadd.s32 1, %s17
    $region7: #{tpu_custom_call.1} parent=1 // loop_footer_branch
      %16 = sbr.rel target = $region3
    $region8: #{tpu_custom_call.1} parent=1 // loop_exit
      _
    %534 = vsyncpa [#allocation3], 1
    %s535 = scalar_lea.sflag [#allocation3], 1
    %536 = vsyncpa %s535, 1

// kernel: tpu_custom_call.1
$region0: #{tpu_custom_call.1}
  #allocation0 [shape = 'u32[]', space=smem, size = 0x4, offset = 0x4, fixed_abs, tag = 'smem constant byte address 0x4 - core index']
  #allocation1 [shape = 'u32[72,128]{1,0:T(1,128)}', space=vmem, size = 0x9000, scoped, tag = 'internal scratch']
  %s0 = inlined_call_operand.vmem [shape: s32[1,16], index: 0, kind: input, shape index: {}]
  %s1 = inlined_call_operand.vmem [shape: f32[16,32], index: 1, kind: input, shape index: {}]
  %s2 = inlined_call_operand.vmem [shape: f32[16,32], index: 2, kind: input, shape index: {}]
  %s3 = inlined_call_operand.hbm [shape: f32[16,32], index: 3, kind: input, shape index: {}]
  %s4 = inlined_call_operand.vmem [shape: s32[16,1], index: 4, kind: input, shape index: {}]
  %s5 = inlined_call_operand.vmem [shape: f32[16,1], index: 5, kind: input, shape index: {}]
  %s6 = inlined_call_operand.vmem [shape: f32[2,1,1], index: 6, kind: output, shape index: {0}]
  %s7 = inlined_call_operand.vmem [shape: f32[2,1,1], index: 7, kind: output, shape index: {1}]
  %8 = xla_tuple %s6, %s7
  %s9 = sld [smem:[#allocation0]]
  $region69: #{tpu_custom_call.1} parent=0
    _
  %s11 = ssub.s32 1, %s9
  %s12 = scalar_select 0, %s11, %s9
  $region1: #{tpu_custom_call.1} parent=0
    #allocation2 [shape = 'u8[8192]{0}', space=vmem, size = 0x2000, scoped, tag = 'input window, operand 3']
    #allocation3 [shape = 's32[2]{0}', space=sflag, size = 0x8, scoped, tag = 'scoped memory for tpu_custom_call.1']
    %13 = vsyncpa [#allocation3], 0
    %s14 = scalar_lea.sflag [#allocation3], 1
    %15 = vsyncpa %s14, 0
    loop: start=0, step=1, limit=4
    $region2: #{tpu_custom_call.1} parent=1 // loop_pre_header
      _
    $region3: #{tpu_custom_call.1} parent=1 // loop_header
      %s17 = sphi 0, %s21
      %p18 = scmp.ge.s32.totalorder %s17, 4
      %s25 = sphi 0, %s25
      %s27 = sphi 0, %s25
      %s28 = sphi 0, %s27
      %s42 = sphi 0, %s28
      %s46 = sphi 0, %s46
      %s48 = sphi 0, %s46
      %s49 = sphi 0, %s48
      %s63 = sphi 0, %s49
      %s69 = sphi 0, %s71
      %s72 = sphi 0, %s69
      %s73 = sphi 0, %s72
      %s89 = sphi 0, %s73
      %s95 = sphi 0, %s97
      %s98 = sphi 0, %s95
      %s99 = sphi 0, %s98
      %s115 = sphi 0, %s99
      %s121 = sphi 0, %s123
      %s124 = sphi 0, %s121
      %s125 = sphi 0, %s124
      %s141 = sphi 0, %s125
      %s147 = sphi 0, %s149
      %s150 = sphi 0, %s147
      %s151 = sphi 0, %s150
      %s167 = sphi 0, %s151
      %s173 = sphi 0, %s175
      %s176 = sphi 0, %s173
      %s177 = sphi 0, %s176
      %s193 = sphi 0, %s177
      %s199 = sphi 0, %s201
      %s202 = sphi 0, %s199
      %s203 = sphi 0, %s202
      %s219 = sphi 0, %s203
    $region4: #{tpu_custom_call.1} parent=1 // loop_header_branch
      %20 = sbr.rel (%p18) target = $region8
    $region5: #{tpu_custom_call.1} parent=1 // loop_body
      %s22 = ssub.s32 %s17, 1
      %s23 = ssub.s32 %s17, 2
      %s24 = sadd.s32 %s17, 1
      %s26 = sadd.s32 %s25, 1
      %p29 = scmp.eq.s32.totalorder %s17, 1
      %p30 = scmp.ne.s32.totalorder %s25, %s27
      %p31 = scmp.eq.s32.totalorder %s17, 0
      %p32 = por %p30, %p31
      %p33 = scmp.ne.s32.totalorder %s25, %s27
      %p34 = scmp.eq.s32.totalorder %s22, 1
      %p35 = por %p33, %p34
      %p36 = scmp.ne.s32.totalorder %s27, %s28
      %p37 = scmp.eq.s32.totalorder %s22, 0
      %p38 = por %p36, %p37
      %p39 = scmp.ne.s32.totalorder %s27, %s28
      %p40 = scmp.eq.s32.totalorder %s23, 1
      %p41 = por %p39, %p40
      %p43 = scmp.ne.s32.totalorder %s28, %s42
      %p44 = scmp.eq.s32.totalorder %s23, 0
      %p45 = por %p43, %p44
      %s47 = sadd.s32 %s46, 1
      %p50 = scmp.eq.s32.totalorder %s17, 1
      %p51 = scmp.ne.s32.totalorder %s46, %s48
      %p52 = scmp.eq.s32.totalorder %s17, 0
      %p53 = por %p51, %p52
      %p54 = scmp.ne.s32.totalorder %s46, %s48
      %p55 = scmp.eq.s32.totalorder %s22, 1
      %p56 = por %p54, %p55
      %p57 = scmp.ne.s32.totalorder %s48, %s49
      %p58 = scmp.eq.s32.totalorder %s22, 0
      %p59 = por %p57, %p58
      %p60 = scmp.ne.s32.totalorder %s48, %s49
      %p61 = scmp.eq.s32.totalorder %s23, 1
      %p62 = por %p60, %p61
      %p64 = scmp.ne.s32.totalorder %s49, %s63
      %p65 = scmp.eq.s32.totalorder %s23, 0
      %p66 = por %p64, %p65
      %s67 = ssub.s32 %s17, %s24
      %p68 = scmp.eq.s32.totalorder %s67, 0
      %s70 = sadd.s32 %s69, 1
      %s71 = scalar_select %p68, %s69, %s70
      %p74 = pneg %p68
      %p75 = scmp.eq.s32.totalorder %s17, 1
      %p76 = por %p74, %p75
      %p77 = scmp.ne.s32.totalorder %s69, %s72
      %p78 = scmp.eq.s32.totalorder %s17, 0
      %p79 = por %p77, %p78
      %p80 = scmp.ne.s32.totalorder %s69, %s72
      %p81 = scmp.eq.s32.totalorder %s22, 1
      %p82 = por %p80, %p81
      %p83 = scmp.ne.s32.totalorder %s72, %s73
      %p84 = scmp.eq.s32.totalorder %s22, 0
      %p85 = por %p83, %p84
      %p86 = scmp.ne.s32.totalorder %s72, %s73
      %p87 = scmp.eq.s32.totalorder %s23, 1
      %p88 = por %p86, %p87
      %p90 = scmp.ne.s32.totalorder %s73, %s89
      %p91 = scmp.eq.s32.totalorder %s23, 0
      %p92 = por %p90, %p91
      %s93 = ssub.s32 %s17, %s24
      %p94 = scmp.eq.s32.totalorder %s93, 0
      %s96 = sadd.s32 %s95, 1
      %s97 = scalar_select %p94, %s95, %s96
      %p100 = pneg %p94
      %p101 = scmp.eq.s32.totalorder %s17, 1
      %p102 = por %p100, %p101
      %p103 = scmp.ne.s32.totalorder %s95, %s98
      %p104 = scmp.eq.s32.totalorder %s17, 0
      %p105 = por %p103, %p104
      %p106 = scmp.ne.s32.totalorder %s95, %s98
      %p107 = scmp.eq.s32.totalorder %s22, 1
      %p108 = por %p106, %p107
      %p109 = scmp.ne.s32.totalorder %s98, %s99
      %p110 = scmp.eq.s32.totalorder %s22, 0
      %p111 = por %p109, %p110
      %p112 = scmp.ne.s32.totalorder %s98, %s99
      %p113 = scmp.eq.s32.totalorder %s23, 1
      %p114 = por %p112, %p113
      %p116 = scmp.ne.s32.totalorder %s99, %s115
      %p117 = scmp.eq.s32.totalorder %s23, 0
      %p118 = por %p116, %p117
      %s119 = ssub.s32 %s17, %s24
      %p120 = scmp.eq.s32.totalorder %s119, 0
      %s122 = sadd.s32 %s121, 1
      %s123 = scalar_select %p120, %s121, %s122
      %p126 = pneg %p120
      %p127 = scmp.eq.s32.totalorder %s17, 1
      %p128 = por %p126, %p127
      %p129 = scmp.ne.s32.totalorder %s121, %s124
      %p130 = scmp.eq.s32.totalorder %s17, 0
      %p131 = por %p129, %p130
      %p132 = scmp.ne.s32.totalorder %s121, %s124
      %p133 = scmp.eq.s32.totalorder %s22, 1
      %p134 = por %p132, %p133
      %p135 = scmp.ne.s32.totalorder %s124, %s125
      %p136 = scmp.eq.s32.totalorder %s22, 0
      %p137 = por %p135, %p136
      %p138 = scmp.ne.s32.totalorder %s124, %s125
      %p139 = scmp.eq.s32.totalorder %s23, 1
      %p140 = por %p138, %p139
      %p142 = scmp.ne.s32.totalorder %s125, %s141
      %p143 = scmp.eq.s32.totalorder %s23, 0
      %p144 = por %p142, %p143
      %s145 = ssub.s32 %s17, %s24
      %p146 = scmp.eq.s32.totalorder %s145, 0
      %s148 = sadd.s32 %s147, 1
      %s149 = scalar_select %p146, %s147, %s148
      %p152 = pneg %p146
      %p153 = scmp.eq.s32.totalorder %s17, 1
      %p154 = por %p152, %p153
      %p155 = scmp.ne.s32.totalorder %s147, %s150
      %p156 = scmp.eq.s32.totalorder %s17, 0
      %p157 = por %p155, %p156
      %p158 = scmp.ne.s32.totalorder %s147, %s150
      %p159 = scmp.eq.s32.totalorder %s22, 1
      %p160 = por %p158, %p159
      %p161 = scmp.ne.s32.totalorder %s150, %s151
      %p162 = scmp.eq.s32.totalorder %s22, 0
      %p163 = por %p161, %p162
      %p164 = scmp.ne.s32.totalorder %s150, %s151
      %p165 = scmp.eq.s32.totalorder %s23, 1
      %p166 = por %p164, %p165
      %p168 = scmp.ne.s32.totalorder %s151, %s167
      %p169 = scmp.eq.s32.totalorder %s23, 0
      %p170 = por %p168, %p169
      %s171 = ssub.s32 %s17, %s24
      %p172 = scmp.eq.s32.totalorder %s171, 0
      %s174 = sadd.s32 %s173, 1
      %s175 = scalar_select %p172, %s173, %s174
      %p178 = pneg %p172
      %p179 = scmp.eq.s32.totalorder %s17, 1
      %p180 = por %p178, %p179
      %p181 = scmp.ne.s32.totalorder %s173, %s176
      %p182 = scmp.eq.s32.totalorder %s17, 0
      %p183 = por %p181, %p182
      %p184 = scmp.ne.s32.totalorder %s173, %s176
      %p185 = scmp.eq.s32.totalorder %s22, 1
      %p186 = por %p184, %p185
      %p187 = scmp.ne.s32.totalorder %s176, %s177
      %p188 = scmp.eq.s32.totalorder %s22, 0
      %p189 = por %p187, %p188
      %p190 = scmp.ne.s32.totalorder %s176, %s177
      %p191 = scmp.eq.s32.totalorder %s23, 1
      %p192 = por %p190, %p191
      %p194 = scmp.ne.s32.totalorder %s177, %s193
      %p195 = scmp.eq.s32.totalorder %s23, 0
      %p196 = por %p194, %p195
      %s197 = ssub.s32 %s17, %s24
      %p198 = scmp.eq.s32.totalorder %s197, 0
      %s200 = sadd.s32 %s199, 1
      %s201 = scalar_select %p198, %s199, %s200
      %p204 = pneg %p198
      %p205 = scmp.eq.s32.totalorder %s17, 1
      %p206 = por %p204, %p205
      %p207 = scmp.ne.s32.totalorder %s199, %s202
      %p208 = scmp.eq.s32.totalorder %s17, 0
      %p209 = por %p207, %p208
      %p210 = scmp.ne.s32.totalorder %s199, %s202
      %p211 = scmp.eq.s32.totalorder %s22, 1
      %p212 = por %p210, %p211
      %p213 = scmp.ne.s32.totalorder %s202, %s203
      %p214 = scmp.eq.s32.totalorder %s22, 0
      %p215 = por %p213, %p214
      %p216 = scmp.ne.s32.totalorder %s202, %s203
      %p217 = scmp.eq.s32.totalorder %s23, 1
      %p218 = por %p216, %p217
      %p220 = scmp.ne.s32.totalorder %s203, %s219
      %p221 = scmp.eq.s32.totalorder %s23, 0
      %p222 = por %p220, %p221
      %p223 = scmp.le.s32.totalorder 1, %s17
      %p224 = scmp.lt.s32.totalorder %s17, 3
      %p225 = pnand %p223, %p224
      %p226 = pneg %p225
      // Predicated region
      $region9: #{tpu_custom_call.1} parent=5 // pred_check
        _
      $region10: #{tpu_custom_call.1} parent=5 // pred_check_branch
        %228 = sbr.rel (%p225) target = $region12
      $region11: #{tpu_custom_call.1} parent=5 // pred_region
        %s229 = ssub.s32 %s17, 1
        // Predicated region
        $region13: #{tpu_custom_call.1} parent=11 // pred_check
          %p230 = pneg %p38
        $region14: #{tpu_custom_call.1} parent=11 // pred_check_branch
          %232 = sbr.rel (%p230) target = $region16
        $region15: #{tpu_custom_call.1} parent=11 // pred_region
          _
        $region16: #{tpu_custom_call.1} parent=11 // pred_fallthru
          _
        // Predicated region
        $region17: #{tpu_custom_call.1} parent=11 // pred_check
          %p233 = pneg %p59
        $region18: #{tpu_custom_call.1} parent=11 // pred_check_branch
          %235 = sbr.rel (%p233) target = $region20
        $region19: #{tpu_custom_call.1} parent=11 // pred_region
          _
        $region20: #{tpu_custom_call.1} parent=11 // pred_fallthru
          _
      $region12: #{tpu_custom_call.1} parent=5 // pred_fallthru
        _
      %p236 = scmp.lt.s32.totalorder %s17, 2
      // Predicated region
      $region21: #{tpu_custom_call.1} parent=5 // pred_check
        %p237 = pneg %p236
      $region22: #{tpu_custom_call.1} parent=5 // pred_check_branch
        %239 = sbr.rel (%p237) target = $region24
      $region23: #{tpu_custom_call.1} parent=5 // pred_region
        // Predicated region
        $region25: #{tpu_custom_call.1} parent=23 // pred_check
          %p240 = pneg %p79
        $region26: #{tpu_custom_call.1} parent=23 // pred_check_branch
          %242 = sbr.rel (%p240) target = $region28
        $region27: #{tpu_custom_call.1} parent=23 // pred_region
          %p243 = scmp.lt.s32.totalorder %s17, 1
          %s244 = scalar_select %p243, %s17, 1
          %s245 = smul.addr %s244, 8
          %s246 = scalar_lea.vmem %s2, %s245
        $region28: #{tpu_custom_call.1} parent=23 // pred_fallthru
          _
        // Predicated region
        $region29: #{tpu_custom_call.1} parent=23 // pred_check
          %p247 = pneg %p105
        $region30: #{tpu_custom_call.1} parent=23 // pred_check_branch
          %249 = sbr.rel (%p247) target = $region32
        $region31: #{tpu_custom_call.1} parent=23 // pred_region
          %s250 = sand.u32 %s95, 1
          %s251 = scalar_lea.sflag [#allocation3], %s250
          %s252 = sand.u32 %s95, 1
          %s253 = smul.addr %s252, 8
          %s254 = scalar_lea.vmem [#allocation2], %s253
          %256 = vsyncadd %s251, 0
          %s257 = smul.addr %s17, 8
          %s258 = scalar_lea.hbm %s3, %s257
          %s260 = sshll.u32 %s258, 4
          %s261 = int_to_ptr.hbm [resolvable:$true] %s260
          %s262 = sshll.u32 %s254, 4
          %s263 = int_to_ptr.vmem [resolvable:$true] %s262
          %265 = dma.hbm_to_vmem [thread:$0]  %s261, 128, %s263, %s251
        $region32: #{tpu_custom_call.1} parent=23 // pred_fallthru
          _
        // Predicated region
        $region33: #{tpu_custom_call.1} parent=23 // pred_check
          %p266 = pneg %p131
        $region34: #{tpu_custom_call.1} parent=23 // pred_check_branch
          %268 = sbr.rel (%p266) target = $region36
        $region35: #{tpu_custom_call.1} parent=23 // pred_region
          %p269 = scmp.lt.s32.totalorder %s17, 1
          %s270 = scalar_select %p269, %s17, 1
          %s271 = smul.addr %s270, 8
          %s272 = scalar_lea.vmem %s4, %s271
        $region36: #{tpu_custom_call.1} parent=23 // pred_fallthru
          _
        // Predicated region
        $region37: #{tpu_custom_call.1} parent=23 // pred_check
          %p273 = pneg %p157
        $region38: #{tpu_custom_call.1} parent=23 // pred_check_branch
          %275 = sbr.rel (%p273) target = $region40
        $region39: #{tpu_custom_call.1} parent=23 // pred_region
          %p276 = scmp.lt.s32.totalorder %s17, 1
          %s277 = scalar_select %p276, %s17, 1
          %s278 = smul.addr %s277, 8
          %s279 = scalar_lea.vmem %s5, %s278
        $region40: #{tpu_custom_call.1} parent=23 // pred_fallthru
          _
      $region24: #{tpu_custom_call.1} parent=5 // pred_fallthru
        _
      %p280 = scmp.le.s32.totalorder 1, %s17
      %p281 = scmp.lt.s32.totalorder %s17, 3
      %p282 = pnand %p280, %p281
      %p283 = pneg %p282
      // Predicated region
      $region41: #{tpu_custom_call.1} parent=5 // pred_check
        _
      $region42: #{tpu_custom_call.1} parent=5 // pred_check_branch
        %285 = sbr.rel (%p282) target = $region44
      $region43: #{tpu_custom_call.1} parent=5 // pred_region
        %s286 = ssub.s32 %s17, 1
        %s287 = sand.u32 %s98, 1
        %s288 = scalar_lea.sflag [#allocation3], %s287
        %s289 = sand.u32 %s98, 1
        %s290 = smul.addr %s289, 8
        %s291 = scalar_lea.vmem [#allocation2], %s290
        // Predicated region
        $region45: #{tpu_custom_call.1} parent=43 // pred_check
          %p292 = pneg %p111
        $region46: #{tpu_custom_call.1} parent=43 // pred_check_branch
          %294 = sbr.rel (%p292) target = $region48
        $region47: #{tpu_custom_call.1} parent=43 // pred_region
          %296 = dma.done %s288, 128
        $region48: #{tpu_custom_call.1} parent=43 // pred_fallthru
          _
        %p297 = pneg %p38
        %p298 = pneg %p35
        %p299 = pneg %p59
        %p300 = pneg %p56
        %p301 = scmp.lt.s32.totalorder %s22, 1
        %s302 = scalar_select %p301, %s22, 1
        %s303 = smul.addr %s302, 8
        %s304 = scalar_lea.vmem %s2, %s303
        %p305 = pneg %p85
        %p306 = pneg %p82
        %s307 = sand.u32 %s98, 1
        %s308 = scalar_lea.sflag [#allocation3], %s307
        %s309 = sand.u32 %s98, 1
        %s310 = smul.addr %s309, 8
        %s311 = scalar_lea.vmem [#allocation2], %s310
        %p312 = pneg %p111
        %p313 = pneg %p108
        %p314 = scmp.lt.s32.totalorder %s22, 1
        %s315 = scalar_select %p314, %s22, 1
        %s316 = smul.addr %s315, 8
        %s317 = scalar_lea.vmem %s4, %s316
        %p318 = pneg %p137
        %p319 = pneg %p134
        %p320 = scmp.lt.s32.totalorder %s22, 1
        %s321 = scalar_select %p320, %s22, 1
        %s322 = smul.addr %s321, 8
        %s323 = scalar_lea.vmem %s5, %s322
        %p324 = pneg %p163
        %p325 = pneg %p160
        %p326 = pneg %p189
        %p327 = pneg %p186
        %p328 = scmp.lt.s32.totalorder %s22, 1
        %s329 = scalar_select %p328, %s22, 1
        %s330 = scalar_lea.vmem %s6, %s329
        %p331 = pneg %p215
        %p332 = pneg %p212
        %p333 = scmp.lt.s32.totalorder %s22, 1
        %s334 = scalar_select %p333, %s22, 1
        %s335 = scalar_lea.vmem %s7, %s334
        %p336 = scmp.lt.s32.totalorder %s22, 1
        %s337 = scalar_select %p336, %s22, 1
        %s338 = smul.addr %s337, 8
        %s339 = scalar_lea.vmem %s2, %s338
        %p340 = scmp.lt.s32.totalorder %s22, 1
        %s341 = scalar_select %p340, %s22, 1
        %s342 = smul.addr %s341, 8
        %s343 = scalar_lea.vmem %s4, %s342
        %p344 = scmp.lt.s32.totalorder %s22, 1
        %s345 = scalar_select %p344, %s22, 1
        %s346 = smul.addr %s345, 8
        %s347 = scalar_lea.vmem %s5, %s346
        %p348 = scmp.lt.s32.totalorder %s22, 1
        %s349 = scalar_select %p348, %s22, 1
        %s350 = scalar_lea.vmem %s6, %s349
        %p351 = scmp.lt.s32.totalorder %s22, 1
        %s352 = scalar_select %p351, %s22, 1
        %s353 = scalar_lea.vmem %s7, %s352
        %v354 = vld [vmem:[%s339] sm:$0xff]
        %v355 = vmul.f32 %v354, %v354
        %vm356 = vcmask 261120
        %v357 = vsel %vm356, %v355, 0.0
        %358 = vadd.xlane.f32.xlu0 %v357
        %v359 = vpop.xlane.xlu0 %358
        %v360 = vmax.f32 %v359, 1e-24
        %v361 = vrsqrt.pop %v360
        %v362 = vmul.f32 %v361, %v360
        %v363 = vmul.f32 %v362, %v361
        %v364 = vmul.f32 0.5, %v363
        %v365 = vsub.f32 1.5, %v364
        %v366 = vmul.f32 %v361, %v365
        %vm367 = vweird.f32 %v360
        %vm368 = vweird.f32 %v361
        %vm369 = vmor %vm367, %vm368
        %v370 = vsel %vm369, %v361, %v366
        %v371 = vmul.f32 %v354, %v370
        %v372 = vmul.f32 %v371, 2.0
        %v373 = vld [vmem:[%s291] sm:$0xff]
        %v374 = vmul.f32 %v373, 2.0
        %v375 = vld [vmem:[%s1] sm:$0xff]
        %v376 = vld [vmem:[%s1 + $0x8] sm:$0xff]
        %v378 = vsel %vm356, %v374, 0
        %v381 = vsel %vm356, %v375, 0
        %v384 = vsel %vm356, %v376, 0
        %386 = vmatpush.xpose.msra.mxu0 0.0
        %387 = vmatpush.xpose.msra.mxu0 0.0
        %388 = vmatpush.xpose.msra.mxu0 0.0
        %389 = vmatpush.xpose.msra.mxu0 0.0
        %390 = vmatpush.xpose.msra.mxu0 0.0
        %391 = vmatpush.xpose.msra.mxu0 0.0
        %392 = vmatpush.xpose.msra.mxu0 0.0
        %393 = vmatpush.xpose.msra.mxu0 0.0
        %394 = vmatpush.xpose.msra.mxu0 0.0
        %395 = vmatpush.xpose.msra.mxu0 0.0
        %396 = vmatpush.xpose.msra.mxu0 0.0
        %397 = vmatpush.xpose.msra.mxu0 0.0
        %398 = vmatpush.xpose.msra.mxu0 0.0
        %399 = vmatpush.xpose.msra.mxu0 0.0
        %400 = vmatpush.xpose.msra.mxu0 %v384
        %401 = vmatpush.xpose.msra.mxu0 %v381
        %402 = vmatmul.f32.gmra.mxu0 %v378
        %v403 = vpop.f32.mrf.mxu0
        %v404 = vadd.f32 0.0, %v403
        %405 = vdwg.mxu0
        %s406 = smul.u32 %s22, 8
        %v407 = vlaneseq
        %v408 = vshrl.u32 %v407, 7
        %v409 = vstv %s406
        %v410 = vadd.s32 %v408, %v409
        %v411 = vlaneseq
        %v412 = vand.u32 %v411, 127
        %vm413 = vcmp.eq.s32.totalorder %v410, %v412
        %vm414 = vcmask 130048
        %v415 = vsel %vm414, %v404, -inf
        %416 = vmax.xlane.f32.xlu0 %v415
        %v417 = vpop.xlane.xlu0 %416
        %v418 = vsub.f32 %v404, %v417
        %v419 = vmul.f32 %v418, 1.442695
        %v420 = vpow.pop %v419
        %v421 = vsel %vm413, 0.0, %v420
        %v422 = vsel %vm414, %v421, 0.0
        %423 = vadd.xlane.f32.xlu0 %v422
        %v424 = vpop.xlane.xlu0 %423
        %v425 = vlog2.pop %v424
        %v426 = vmul.f32 %v425, 0.6931472
        %v428 = vsel %vm356, %v372, 0
        %430 = vmatpush.xpose.msra.mxu0 0.0
        %431 = vmatpush.xpose.msra.mxu0 0.0
        %432 = vmatpush.xpose.msra.mxu0 0.0
        %433 = vmatpush.xpose.msra.mxu0 0.0
        %434 = vmatpush.xpose.msra.mxu0 0.0
        %435 = vmatpush.xpose.msra.mxu0 0.0
        %436 = vmatpush.xpose.msra.mxu0 0.0
        %437 = vmatpush.xpose.msra.mxu0 0.0
        %438 = vmatpush.xpose.msra.mxu0 0.0
        %439 = vmatpush.xpose.msra.mxu0 0.0
        %440 = vmatpush.xpose.msra.mxu0 0.0
        %441 = vmatpush.xpose.msra.mxu0 0.0
        %442 = vmatpush.xpose.msra.mxu0 0.0
        %443 = vmatpush.xpose.msra.mxu0 0.0
        %444 = vmatpush.xpose.msra.mxu0 %v384
        %445 = vmatpush.xpose.msra.mxu0 %v381
        %446 = vmatmul.f32.gmra.mxu0 %v428
        %v447 = vpop.f32.mrf.mxu0
        %v448 = vadd.f32 0.0, %v447
        %449 = vdwg.mxu0
        %v450 = vsel %vm414, %v448, -inf
        %451 = vmax.xlane.f32.xlu0 %v450
        %v452 = vpop.xlane.xlu0 %451
        %v453 = vsub.f32 %v448, %v452
        %v454 = vld [vmem:[%s343] sm:$0xff]
        %v455 = vld [vmem:[%s0] sm:$0x1]
        %456 = vset.pattern.permute.xlu0 0
        %457 = vperm.xlu0 %456, %v454
        %v458 = vpop.permute.xlu0 %457
        %v459 = vperm.slane %v455, 0
        %vm460 = vcmp.eq.s32.totalorder %v458, %v459
        %v461 = vsel %vm460, %v453, 0.0
        %v462 = vsel %vm414, %v461, 0.0
        %463 = vadd.xlane.f32.xlu0 %v462
        %v464 = vpop.xlane.xlu0 %463
        %v465 = vld [vmem:[%s347] sm:$0xff]
        %vm466 = vcmp.gt.f32.partialorder %v465, 0.0
        %v467 = vsel %vm466, %v465, 1.0
        %v468 = vrcp.pop %v467
        %v469 = vmul.f32 %v467, %v468
        %v470 = vsub.f32 1.0, %v469
        %v471 = vmul.f32 %v468, %v470
        %v472 = vadd.f32 %v468, %v471
        %vm473 = vweird.f32 %v467
        %vm474 = vweird.f32 %v468
        %vm475 = vmor %vm473, %vm474
        %v476 = vsel %vm475, %v468, %v472
        %v477 = vand.u32 2147483647, %v467
        %vm478 = vcmp.eq.f32.partialorder %v477, 8.507059e+37
        %v479 = vand.u32 %v467, 2147483648
        %v480 = vor.u32 1.1754944e-38, %v479
        %v481 = vsel %vm478, %v480, %v476
        %v482 = vmul.f32 %v464, %v481
        %v483 = vsub.f32 %v482, %v426
        %v484 = vsel %vm466, %v483, 0.0
        %vm485 = vcmask 7168
        %v486 = vsel %vm485, %v484, 0.0
        %v487 = vrot.slane %v486, 4
        %v488 = vadd.f32 %v486, %v487
        %v489 = vrot.slane %v488, 2
        %v490 = vadd.f32 %v488, %v489
        %v491 = vrot.slane %v490, 1
        %v492 = vadd.f32 %v490, %v491
        %vm493 = vcmask 0
        %494 = vst.msk [vmem:[%s350] sm:$0x1] %vm493, %v492
        %v495 = vsel %vm466, 1, 0
        %v496 = vcvt.s32.f32 %v495
        %v497 = vsel %vm485, %v496, 0.0
        %v498 = vrot.slane %v497, 4
        %v499 = vadd.f32 %v497, %v498
        %v500 = vrot.slane %v499, 2
        %v501 = vadd.f32 %v499, %v500
        %v502 = vrot.slane %v501, 1
        %v503 = vadd.f32 %v501, %v502
        %504 = vst.msk [vmem:[%s353] sm:$0x1] %vm493, %v503
        %p505 = scmp.lt.s32.totalorder %s22, 1
        %s506 = scalar_select %p505, %s22, 1
        %s507 = scalar_lea.vmem %s6, %s506
        %p508 = scmp.lt.s32.totalorder %s22, 1
        %s509 = scalar_select %p508, %s22, 1
        %s510 = scalar_lea.vmem %s7, %s509
        // Predicated region
        $region49: #{tpu_custom_call.1} parent=43 // pred_check
          %p511 = pneg %p186
        $region50: #{tpu_custom_call.1} parent=43 // pred_check_branch
          %513 = sbr.rel (%p511) target = $region52
        $region51: #{tpu_custom_call.1} parent=43 // pred_region
          _
        $region52: #{tpu_custom_call.1} parent=43 // pred_fallthru
          _
        // Predicated region
        $region53: #{tpu_custom_call.1} parent=43 // pred_check
          %p514 = pneg %p212
        $region54: #{tpu_custom_call.1} parent=43 // pred_check_branch
          %516 = sbr.rel (%p514) target = $region56
        $region55: #{tpu_custom_call.1} parent=43 // pred_region
          _
        $region56: #{tpu_custom_call.1} parent=43 // pred_fallthru
          _
      $region44: #{tpu_custom_call.1} parent=5 // pred_fallthru
        _
      %p517 = scmp.le.s32.totalorder 2, %s17
      // Predicated region
      $region57: #{tpu_custom_call.1} parent=5 // pred_check
        %p518 = pneg %p517
      $region58: #{tpu_custom_call.1} parent=5 // pred_check_branch
        %520 = sbr.rel (%p518) target = $region60
      $region59: #{tpu_custom_call.1} parent=5 // pred_region
        %s521 = ssub.s32 %s17, 2
        // Predicated region
        $region61: #{tpu_custom_call.1} parent=59 // pred_check
          %p522 = pneg %p192
        $region62: #{tpu_custom_call.1} parent=59 // pred_check_branch
          %524 = sbr.rel (%p522) target = $region64
        $region63: #{tpu_custom_call.1} parent=59 // pred_region
          %p525 = scmp.lt.s32.totalorder %s23, 1
          %s526 = scalar_select %p525, %s23, 1
          %s527 = scalar_lea.vmem %s6, %s526
        $region64: #{tpu_custom_call.1} parent=59 // pred_fallthru
          _
        // Predicated region
        $region65: #{tpu_custom_call.1} parent=59 // pred_check
          %p528 = pneg %p218
        $region66: #{tpu_custom_call.1} parent=59 // pred_check_branch
          %530 = sbr.rel (%p528) target = $region68
        $region67: #{tpu_custom_call.1} parent=59 // pred_region
          %p531 = scmp.lt.s32.totalorder %s23, 1
          %s532 = scalar_select %p531, %s23, 1
          %s533 = scalar_lea.vmem %s7, %s532
        $region68: #{tpu_custom_call.1} parent=59 // pred_fallthru
          _
      $region60: #{tpu_custom_call.1} parent=5 // pred_fallthru
        _
    $region6: #{tpu_custom_call.1} parent=1 // loop_footer
      %s21 = sadd.s32 1, %s17
    $region7: #{tpu_custom_call.1} parent=1 // loop_footer_branch
      %16 = sbr.rel target = $region3
    $region8: #{tpu_custom_call.1} parent=1 // loop_exit
      _
    %534 = vsyncpa [#allocation3], 1
    %s535 = scalar_lea.sflag [#allocation3], 1
    %536 = vsyncpa %s535, 1

</llo_original>
